<compile_context>
chip_gen: v7x
topology: tpu7x:2x2x1
jax: 0.10.0
libtpu: 0.0.40
codegen_flags: <defaults>
</compile_context>

<pallas_src>
import functools
import numpy as np
import jax
import jax.numpy as jnp
from jax.experimental import pallas as pl
from jax.experimental.pallas import tpu as pltpu


def _shift_masks(H, W):
    """(9, 1, H*W) float32 validity masks for the 9 taps of a 3x3 'same' conv.

    Tap k = (dh+1)*3 + (dw+1) reads pixel (h+dh, w+dw); the mask zeroes flat positions
    whose shifted source falls in the zero-padding region (row/col wrap of the roll).
    """
    HW = H * W
    hh, ww = np.meshgrid(np.arange(H), np.arange(W), indexing="ij")
    hh = hh.reshape(-1)
    ww = ww.reshape(-1)
    m = np.zeros((9, 1, HW), np.float32)
    k = 0
    for dh in (-1, 0, 1):
        for dw in (-1, 0, 1):
            ok = (hh + dh >= 0) & (hh + dh < H) & (ww + dw >= 0) & (ww + dw < W)
            m[k, 0, :] = ok.astype(np.float32)
            k += 1
    return jnp.asarray(m)


def _pc_kernel(W, x_ref, mask_ref, w3_ref, b3_ref, w1_ref, b1_ref,
               w2_ref, b2_ref, wc_ref, bc_ref, out_ref, y_ref, cat_ref):
    # Per grid step (b, qi):
    #   x_ref:    (1, C, HW)  f32   full spatial slab for this batch element
    #   mask_ref: (9, 1, HW)  f32   per-tap boundary masks
    #   w3_ref:   (9, C, C)   bf16  3x3 conv weights, tap-major (co, ci)
    #   b3_ref:   (C, 1) f32
    #   w1_ref:   (C16, C) f32, b1_ref: (C16, 1) f32
    #   w2_ref:   (C, C16) f32, b2_ref: (C, 1) f32
    #   wc_ref:   (C, 2C) bf16, bc_ref: (C, 1) f32
    #   out_ref:  (1, C, Tq)  f32   q-column tile of the output
    #   y_ref:    (C, HW)     bf16  scratch: conv output (for dynamic q slicing)
    #   cat_ref:  (2C, Tq)    bf16  scratch: [x1; x2] for the fused 1x1 conv
    C, HW = x_ref.shape[1], x_ref.shape[2]
    Tq = out_ref.shape[2]
    q0 = pl.multiple_of(pl.program_id(1) * Tq, Tq)

    x = x_ref[0]                                                   # (C, HW) f32

    # ---------------- ChannelBlock (mode='No-residual'); tiny MLP, keep f32 -----
    pooled = jnp.mean(x, axis=1, keepdims=True)                    # (C, 1) adaptive avg pool
    h1 = jnp.dot(w1_ref[...], pooled, preferred_element_type=jnp.float32) + b1_ref[...]
    h1 = jnp.maximum(h1, 0.0)                                      # ReLU
    att = jax.nn.sigmoid(
        jnp.dot(w2_ref[...], h1, preferred_element_type=jnp.float32) + b2_ref[...])  # (C, 1)

    # ---------------- PointBlock: 3x3 conv (padding=1), in-kernel ---------------
    # y[:, p] = sum_{dh,dw} W3[tap] @ x[:, p + dh*W + dw]   (zero outside the image)
    y = jnp.zeros((C, HW), jnp.float32)
    k = 0
    for dh in (-1, 0, 1):
        for dw in (-1, 0, 1):
            d = dh * W + dw
            if d == 0:
                tap = x
            else:
                # roll so tap[:, p] = x[:, p + d]; mask zeroes the row/col wrap-around.
                tap = pltpu.roll(x, shift=(-d) % HW, axis=1) * mask_ref[k]
            y = y + jnp.dot(w3_ref[k], tap.astype(jnp.bfloat16),
                            preferred_element_type=jnp.float32)
            k += 1
    y = y + b3_ref[...]                                            # (C, HW) f32
    y_bf = y.astype(jnp.bfloat16)
    y_ref[...] = y_bf                                              # persist for q slicing
    yq_bf = y_ref[:, pl.ds(q0, Tq)]                                # (C, Tq)

    # Gram columns for this q tile: A[p, q] = sum_c y[c, p] * y[c, q]  (symmetric).
    A = jax.lax.dot_general(y_bf, yq_bf, (((0,), (0,)), ((), ())),
                            preferred_element_type=jnp.float32)    # (HW, Tq)
    # torch.softmax(dim=1) == per-column softmax over axis 0 of A.  The normalization
    # is folded into the attention output (never materialize S = E / colsum).
    A = A - jnp.max(A, axis=0, keepdims=True)
    E = jnp.exp(A)                                                 # (HW, Tq) f32
    inv = pl.reciprocal(jnp.sum(E, axis=0, keepdims=True), approx=True)   # (1, Tq)
    x2 = jnp.dot(y_bf, E.astype(jnp.bfloat16),
                 preferred_element_type=jnp.float32) * inv         # (C, Tq)

    # ---------------- concat + fused 1x1 conv + residual ------------------------
    xq = x_ref[0, :, pl.ds(q0, Tq)]                                # (C, Tq) f32
    x1 = xq * att                                                  # (C, Tq)
    cat_ref[0:C, :] = x1.astype(jnp.bfloat16)
    cat_ref[C:2 * C, :] = x2.astype(jnp.bfloat16)
    fused = jnp.dot(wc_ref[...], cat_ref[...],
                    preferred_element_type=jnp.float32) + bc_ref[...]
    out_ref[0] = (fused + xq).astype(out_ref.dtype)


def pcblock_cat_forward(x, params, q_tile=None):
    """x: (B, C, H, W) float32, NCHW (matching PyTorch). Returns (B, C, H, W)."""
    B, C, H, W = x.shape
    HW = H * W
    C16 = C // 16
    assert C16 >= 1, "channel_num must be >= 16 (module uses C//16 hidden units)"

    if q_tile is None:                  # largest lane-dense tile (<=512) dividing HW
        q_tile = HW
        for cand in (512, 384, 256, 128):
            if HW % cand == 0:
                q_tile = cand
                break
    assert HW % q_tile == 0
    nq = HW // q_tile

    x_flat = x.reshape(B, C, HW)
    masks = _shift_masks(H, W)                                           # (9, 1, HW)
    # 3x3 conv weight (Cout, Cin, 3, 3) -> tap-major (9, Cout, Cin), bf16 MXU operand.
    w3 = jnp.transpose(params["conv3_w"], (2, 3, 0, 1)).reshape(9, C, C).astype(jnp.bfloat16)
    b3 = params["conv3_b"].reshape(C, 1)
    w1 = params["lin1_w"]                        # (C16, C)
    b1 = params["lin1_b"].reshape(C16, 1)
    w2 = params["lin2_w"]                        # (C, C16)
    b2 = params["lin2_b"].reshape(C, 1)
    wc = params["conv1_w"].reshape(C, 2 * C).astype(jnp.bfloat16)
    bc = params["conv1_b"].reshape(C, 1)

    full = lambda shp: pl.BlockSpec(shp, lambda b, q, _s=shp: (0,) * len(_s))

    out = pl.pallas_call(
        functools.partial(_pc_kernel, W),
        out_shape=jax.ShapeDtypeStruct((B, C, HW), jnp.float32),
        grid_spec=pltpu.PrefetchScalarGridSpec(
            num_scalar_prefetch=0,
            grid=(B, nq),
            in_specs=[
                pl.BlockSpec((1, C, HW), lambda b, q: (b, 0, 0)),   # x (full spatial)
                full((9, 1, HW)),                                   # tap masks
                full((9, C, C)),                                    # w3 (bf16)
                full((C, 1)),                                       # b3
                full((C16, C)),                                     # w1
                full((C16, 1)),                                     # b1
                full((C, C16)),                                     # w2
                full((C, 1)),                                       # b2
                full((C, 2 * C)),                                   # wc (bf16)
                full((C, 1)),                                       # bc
            ],
            out_specs=pl.BlockSpec((1, C, q_tile), lambda b, q: (b, 0, q)),
            scratch_shapes=[
                pltpu.VMEM((C, HW), jnp.bfloat16),                  # conv output y
                pltpu.VMEM((2 * C, q_tile), jnp.bfloat16),          # [x1; x2] concat
            ]),
        compiler_params=pltpu.CompilerParams(
            dimension_semantics=("parallel", "parallel"),
            vmem_limit_bytes=48 * 1024 * 1024),
    )(x_flat, masks, w3, b3, w1, b1, w2, b2, wc, bc)

    return out.reshape(B, C, H, W)


def pcblock_cat_reference(x, params):
    """Pure-JAX reference mirroring the PyTorch forward (for sanity checking)."""
    B, C, H, W = x.shape
    HW = H * W
    # ChannelBlock (No-residual)
    pooled = x.mean(axis=(2, 3))                                          # (B, C)
    h1 = jax.nn.relu(pooled @ params["lin1_w"].T + params["lin1_b"])      # (B, C16)
    att = jax.nn.sigmoid(h1 @ params["lin2_w"].T + params["lin2_b"])      # (B, C)
    x1 = x * att[:, :, None, None]
    # PointBlock (No-residual)
    y = jax.lax.conv_general_dilated(
        x, params["conv3_w"], window_strides=(1, 1), padding=((1, 1), (1, 1)),
        dimension_numbers=("NCHW", "OIHW", "NCHW")) + params["conv3_b"][None, :, None, None]
    yf = y.reshape(B, C, HW)
    A = jnp.einsum("bcp,bcq->bpq", yf, yf)
    S = jax.nn.softmax(A, axis=1)
    x2 = jnp.einsum("bcp,bpq->bcq", yf, S)
    # concat + 1x1 conv + residual
    cat = jnp.concatenate([x1.reshape(B, C, HW), x2], axis=1)             # (B, 2C, HW)
    wc = params["conv1_w"].reshape(C, 2 * C)
    out = jnp.einsum("od,bdp->bop", wc, cat) + params["conv1_b"][None, :, None]
    return (out + x.reshape(B, C, HW)).reshape(B, C, H, W)


def init_params(key, C):
    C16 = C // 16
    ks = jax.random.split(key, 8)
    return {
        "conv3_w": 0.05 * jax.random.normal(ks[0], (C, C, 3, 3), jnp.float32),
        "conv3_b": 0.01 * jax.random.normal(ks[1], (C,), jnp.float32),
        "lin1_w": 0.1 * jax.random.normal(ks[2], (C16, C), jnp.float32),
        "lin1_b": 0.01 * jax.random.normal(ks[3], (C16,), jnp.float32),
        "lin2_w": 0.1 * jax.random.normal(ks[4], (C, C16), jnp.float32),
        "lin2_b": 0.01 * jax.random.normal(ks[5], (C,), jnp.float32),
        "conv1_w": 0.05 * jax.random.normal(ks[6], (C, 2 * C, 1, 1), jnp.float32),
        "conv1_b": 0.01 * jax.random.normal(ks[7], (C,), jnp.float32),
    }


if __name__ == "__main__":
    # channel_num=16 so the MLP hidden size is 16//16 = 1; HW = 256 (lane-dense),
    # q_tile=128 exercises the 2-tile attention path.
    B, C, H, W = 2, 16, 16, 16
    key = jax.random.PRNGKey(0)
    kx, kp = jax.random.split(key)
    x = jax.random.normal(kx, (B, C, H, W), jnp.float32)
    params = init_params(kp, C)

    out = jax.block_until_ready(pcblock_cat_forward(x, params, q_tile=128))
    ref = jax.block_until_ready(pcblock_cat_reference(x, params))
    assert out.shape == (B, C, H, W)
    np.testing.assert_allclose(np.asarray(out), np.asarray(ref), rtol=5e-2, atol=5e-2)

    print("KERNEL_OK")
</pallas_src>

<mosaic_0001>
module attributes {stable_mosaic.version = 11 : i64} {
  func.func @_pc_kernel(%arg0: i32, %arg1: i32, %arg2: memref<1x16x256xf32, #tpu.memory_space<vmem>>, %arg3: memref<9x1x256xf32, #tpu.memory_space<vmem>>, %arg4: memref<9x16x16xbf16, #tpu.memory_space<vmem>>, %arg5: memref<16x1xf32, #tpu.memory_space<vmem>>, %arg6: memref<1x16xf32, #tpu.memory_space<vmem>>, %arg7: memref<1x1xf32, #tpu.memory_space<vmem>>, %arg8: memref<16x1xf32, #tpu.memory_space<vmem>>, %arg9: memref<16x1xf32, #tpu.memory_space<vmem>>, %arg10: memref<16x32xbf16, #tpu.memory_space<vmem>>, %arg11: memref<16x1xf32, #tpu.memory_space<vmem>>, %arg12: memref<1x16x128xf32, #tpu.memory_space<vmem>>, %arg13: memref<16x256xbf16, #tpu.memory_space<vmem>>, %arg14: memref<32x128xbf16, #tpu.memory_space<vmem>>) attributes {dimension_semantics = [#tpu.dimension_semantics<parallel>, #tpu.dimension_semantics<parallel>], iteration_bounds = array<i64: 2, 2>, scalar_prefetch = 0 : i64, scratch_operands = 2 : i64, tpu.core_type = #tpu.core_type<tc>, window_params = [{transform_indices = @transform_0, window_bounds = array<i64: 1, 16, 256>}, {pipeline_mode = #tpu.pipeline_mode<synchronous>, transform_indices = @transform_1, window_bounds = array<i64: 9, 1, 256>}, {pipeline_mode = #tpu.pipeline_mode<synchronous>, transform_indices = @transform_2, window_bounds = array<i64: 9, 16, 16>}, {pipeline_mode = #tpu.pipeline_mode<synchronous>, transform_indices = @transform_3, window_bounds = array<i64: 16, 1>}, {pipeline_mode = #tpu.pipeline_mode<synchronous>, transform_indices = @transform_4, window_bounds = array<i64: 1, 16>}, {pipeline_mode = #tpu.pipeline_mode<synchronous>, transform_indices = @transform_5, window_bounds = array<i64: 1, 1>}, {pipeline_mode = #tpu.pipeline_mode<synchronous>, transform_indices = @transform_6, window_bounds = array<i64: 16, 1>}, {pipeline_mode = #tpu.pipeline_mode<synchronous>, transform_indices = @transform_7, window_bounds = array<i64: 16, 1>}, {pipeline_mode = #tpu.pipeline_mode<synchronous>, transform_indices = @transform_8, window_bounds = array<i64: 16, 32>}, {pipeline_mode = #tpu.pipeline_mode<synchronous>, transform_indices = @transform_9, window_bounds = array<i64: 16, 1>}, {transform_indices = @transform_10, window_bounds = array<i64: 1, 16, 128>}]} {
    %c128_i32 = arith.constant 128 : i32
    %0 = arith.muli %arg1, %c128_i32 : i32
    %1 = tpu.assume_multiple %0, 128 : i32
    %c0 = arith.constant 0 : index
    %c0_0 = arith.constant 0 : index
    %c0_1 = arith.constant 0 : index
    %2 = vector.load %arg2[%c0, %c0_0, %c0_1] : memref<1x16x256xf32, #tpu.memory_space<vmem>>, vector<1x16x256xf32>
    %3 = vector.shape_cast %2 : vector<1x16x256xf32> to vector<16x256xf32>
    %cst = arith.constant dense<0.000000e+00> : vector<16xf32>
    %4 = vector.multi_reduction <add>, %3, %cst [1] : vector<16x256xf32> to vector<16xf32>
    %5 = vector.shape_cast %4 : vector<16xf32> to vector<16x1xf32>
    %cst_2 = arith.constant 2.560000e+02 : f32
    %6 = vector.broadcast %cst_2 : f32 to vector<16x1xf32>
    %7 = arith.divf %5, %6 : vector<16x1xf32>
    %c0_3 = arith.constant 0 : index
    %c0_4 = arith.constant 0 : index
    %8 = vector.load %arg6[%c0_3, %c0_4] : memref<1x16xf32, #tpu.memory_space<vmem>>, vector<1x16xf32>
    %cst_5 = arith.constant dense<0.000000e+00> : vector<1x1xf32>
    %9 = tpu.matmul %8, %7, %cst_5 {dimension_numbers = #tpu.dot_dimension_numbers<[1], [0], [0], [1], [0, 0, 1, 1], [], []>} : vector<1x16xf32>, vector<16x1xf32>, vector<1x1xf32> -> vector<1x1xf32>
    %c0_6 = arith.constant 0 : index
    %c0_7 = arith.constant 0 : index
    %10 = vector.load %arg7[%c0_6, %c0_7] : memref<1x1xf32, #tpu.memory_space<vmem>>, vector<1x1xf32>
    %11 = arith.addf %9, %10 : vector<1x1xf32>
    %cst_8 = arith.constant 0.000000e+00 : f32
    %12 = vector.broadcast %cst_8 : f32 to vector<1x1xf32>
    %13 = arith.maximumf %11, %12 : vector<1x1xf32>
    %c0_9 = arith.constant 0 : index
    %c0_10 = arith.constant 0 : index
    %14 = vector.load %arg8[%c0_9, %c0_10] : memref<16x1xf32, #tpu.memory_space<vmem>>, vector<16x1xf32>
    %cst_11 = arith.constant dense<0.000000e+00> : vector<16x1xf32>
    %15 = tpu.matmul %14, %13, %cst_11 {dimension_numbers = #tpu.dot_dimension_numbers<[1], [0], [0], [1], [0, 0, 1, 1], [], []>} : vector<16x1xf32>, vector<1x1xf32>, vector<16x1xf32> -> vector<16x1xf32>
    %c0_12 = arith.constant 0 : index
    %c0_13 = arith.constant 0 : index
    %16 = vector.load %arg9[%c0_12, %c0_13] : memref<16x1xf32, #tpu.memory_space<vmem>>, vector<16x1xf32>
    %17 = arith.addf %15, %16 : vector<16x1xf32>
    %18 = arith.negf %17 : vector<16x1xf32>
    %19 = math.exp %18 : vector<16x1xf32>
    %cst_14 = arith.constant 1.000000e+00 : f32
    %20 = vector.broadcast %cst_14 : f32 to vector<16x1xf32>
    %21 = arith.addf %20, %19 : vector<16x1xf32>
    %22 = arith.divf %20, %21 : vector<16x1xf32>
    %cst_15 = arith.constant 0.000000e+00 : f32
    %23 = vector.broadcast %cst_15 : f32 to vector<16x256xf32>
    %c17_i32 = arith.constant 17 : i32
    %24 = tpu.dynamic_rotate %3 by %c17_i32 dim 1 : vector<16x256xf32>, i32 -> vector<16x256xf32>
    %c0_16 = arith.constant 0 : index
    %c0_17 = arith.constant 0 : index
    %c0_18 = arith.constant 0 : index
    %25 = vector.load %arg3[%c0_16, %c0_17, %c0_18] : memref<9x1x256xf32, #tpu.memory_space<vmem>>, vector<1x1x256xf32>
    %26 = vector.shape_cast %25 : vector<1x1x256xf32> to vector<1x256xf32>
    %27 = vector.broadcast %26 : vector<1x256xf32> to vector<16x256xf32>
    %28 = arith.mulf %24, %27 : vector<16x256xf32>
    %c0_19 = arith.constant 0 : index
    %c0_20 = arith.constant 0 : index
    %c0_21 = arith.constant 0 : index
    %29 = vector.load %arg4[%c0_19, %c0_20, %c0_21] : memref<9x16x16xbf16, #tpu.memory_space<vmem>>, vector<1x16x16xbf16>
    %30 = vector.shape_cast %29 : vector<1x16x16xbf16> to vector<16x16xbf16>
    %31 = arith.truncf %28 : vector<16x256xf32> to vector<16x256xbf16>
    %cst_22 = arith.constant dense<0.000000e+00> : vector<16x256xf32>
    %32 = tpu.matmul %30, %31, %cst_22 {dimension_numbers = #tpu.dot_dimension_numbers<[1], [0], [0], [1], [0, 0, 1, 1], [], []>} : vector<16x16xbf16>, vector<16x256xbf16>, vector<16x256xf32> -> vector<16x256xf32>
    %33 = arith.addf %23, %32 : vector<16x256xf32>
    %c16_i32 = arith.constant 16 : i32
    %34 = tpu.dynamic_rotate %3 by %c16_i32 dim 1 : vector<16x256xf32>, i32 -> vector<16x256xf32>
    %c1 = arith.constant 1 : index
    %c0_23 = arith.constant 0 : index
    %c0_24 = arith.constant 0 : index
    %35 = vector.load %arg3[%c1, %c0_23, %c0_24] : memref<9x1x256xf32, #tpu.memory_space<vmem>>, vector<1x1x256xf32>
    %36 = vector.shape_cast %35 : vector<1x1x256xf32> to vector<1x256xf32>
    %37 = vector.broadcast %36 : vector<1x256xf32> to vector<16x256xf32>
    %38 = arith.mulf %34, %37 : vector<16x256xf32>
    %c1_25 = arith.constant 1 : index
    %c0_26 = arith.constant 0 : index
    %c0_27 = arith.constant 0 : index
    %39 = vector.load %arg4[%c1_25, %c0_26, %c0_27] : memref<9x16x16xbf16, #tpu.memory_space<vmem>>, vector<1x16x16xbf16>
    %40 = vector.shape_cast %39 : vector<1x16x16xbf16> to vector<16x16xbf16>
    %41 = arith.truncf %38 : vector<16x256xf32> to vector<16x256xbf16>
    %cst_28 = arith.constant dense<0.000000e+00> : vector<16x256xf32>
    %42 = tpu.matmul %40, %41, %cst_28 {dimension_numbers = #tpu.dot_dimension_numbers<[1], [0], [0], [1], [0, 0, 1, 1], [], []>} : vector<16x16xbf16>, vector<16x256xbf16>, vector<16x256xf32> -> vector<16x256xf32>
    %43 = arith.addf %33, %42 : vector<16x256xf32>
    %c15_i32 = arith.constant 15 : i32
    %44 = tpu.dynamic_rotate %3 by %c15_i32 dim 1 : vector<16x256xf32>, i32 -> vector<16x256xf32>
    %c2 = arith.constant 2 : index
    %c0_29 = arith.constant 0 : index
    %c0_30 = arith.constant 0 : index
    %45 = vector.load %arg3[%c2, %c0_29, %c0_30] : memref<9x1x256xf32, #tpu.memory_space<vmem>>, vector<1x1x256xf32>
    %46 = vector.shape_cast %45 : vector<1x1x256xf32> to vector<1x256xf32>
    %47 = vector.broadcast %46 : vector<1x256xf32> to vector<16x256xf32>
    %48 = arith.mulf %44, %47 : vector<16x256xf32>
    %c2_31 = arith.constant 2 : index
    %c0_32 = arith.constant 0 : index
    %c0_33 = arith.constant 0 : index
    %49 = vector.load %arg4[%c2_31, %c0_32, %c0_33] : memref<9x16x16xbf16, #tpu.memory_space<vmem>>, vector<1x16x16xbf16>
    %50 = vector.shape_cast %49 : vector<1x16x16xbf16> to vector<16x16xbf16>
    %51 = arith.truncf %48 : vector<16x256xf32> to vector<16x256xbf16>
    %cst_34 = arith.constant dense<0.000000e+00> : vector<16x256xf32>
    %52 = tpu.matmul %50, %51, %cst_34 {dimension_numbers = #tpu.dot_dimension_numbers<[1], [0], [0], [1], [0, 0, 1, 1], [], []>} : vector<16x16xbf16>, vector<16x256xbf16>, vector<16x256xf32> -> vector<16x256xf32>
    %53 = arith.addf %43, %52 : vector<16x256xf32>
    %c1_i32 = arith.constant 1 : i32
    %54 = tpu.dynamic_rotate %3 by %c1_i32 dim 1 : vector<16x256xf32>, i32 -> vector<16x256xf32>
    %c3 = arith.constant 3 : index
    %c0_35 = arith.constant 0 : index
    %c0_36 = arith.constant 0 : index
    %55 = vector.load %arg3[%c3, %c0_35, %c0_36] : memref<9x1x256xf32, #tpu.memory_space<vmem>>, vector<1x1x256xf32>
    %56 = vector.shape_cast %55 : vector<1x1x256xf32> to vector<1x256xf32>
    %57 = vector.broadcast %56 : vector<1x256xf32> to vector<16x256xf32>
    %58 = arith.mulf %54, %57 : vector<16x256xf32>
    %c3_37 = arith.constant 3 : index
    %c0_38 = arith.constant 0 : index
    %c0_39 = arith.constant 0 : index
    %59 = vector.load %arg4[%c3_37, %c0_38, %c0_39] : memref<9x16x16xbf16, #tpu.memory_space<vmem>>, vector<1x16x16xbf16>
    %60 = vector.shape_cast %59 : vector<1x16x16xbf16> to vector<16x16xbf16>
    %61 = arith.truncf %58 : vector<16x256xf32> to vector<16x256xbf16>
    %cst_40 = arith.constant dense<0.000000e+00> : vector<16x256xf32>
    %62 = tpu.matmul %60, %61, %cst_40 {dimension_numbers = #tpu.dot_dimension_numbers<[1], [0], [0], [1], [0, 0, 1, 1], [], []>} : vector<16x16xbf16>, vector<16x256xbf16>, vector<16x256xf32> -> vector<16x256xf32>
    %63 = arith.addf %53, %62 : vector<16x256xf32>
    %c4 = arith.constant 4 : index
    %c0_41 = arith.constant 0 : index
    %c0_42 = arith.constant 0 : index
    %64 = vector.load %arg4[%c4, %c0_41, %c0_42] : memref<9x16x16xbf16, #tpu.memory_space<vmem>>, vector<1x16x16xbf16>
    %65 = vector.shape_cast %64 : vector<1x16x16xbf16> to vector<16x16xbf16>
    %66 = arith.truncf %3 : vector<16x256xf32> to vector<16x256xbf16>
    %cst_43 = arith.constant dense<0.000000e+00> : vector<16x256xf32>
    %67 = tpu.matmul %65, %66, %cst_43 {dimension_numbers = #tpu.dot_dimension_numbers<[1], [0], [0], [1], [0, 0, 1, 1], [], []>} : vector<16x16xbf16>, vector<16x256xbf16>, vector<16x256xf32> -> vector<16x256xf32>
    %68 = arith.addf %63, %67 : vector<16x256xf32>
    %c255_i32 = arith.constant 255 : i32
    %69 = tpu.dynamic_rotate %3 by %c255_i32 dim 1 : vector<16x256xf32>, i32 -> vector<16x256xf32>
    %c5 = arith.constant 5 : index
    %c0_44 = arith.constant 0 : index
    %c0_45 = arith.constant 0 : index
    %70 = vector.load %arg3[%c5, %c0_44, %c0_45] : memref<9x1x256xf32, #tpu.memory_space<vmem>>, vector<1x1x256xf32>
    %71 = vector.shape_cast %70 : vector<1x1x256xf32> to vector<1x256xf32>
    %72 = vector.broadcast %71 : vector<1x256xf32> to vector<16x256xf32>
    %73 = arith.mulf %69, %72 : vector<16x256xf32>
    %c5_46 = arith.constant 5 : index
    %c0_47 = arith.constant 0 : index
    %c0_48 = arith.constant 0 : index
    %74 = vector.load %arg4[%c5_46, %c0_47, %c0_48] : memref<9x16x16xbf16, #tpu.memory_space<vmem>>, vector<1x16x16xbf16>
    %75 = vector.shape_cast %74 : vector<1x16x16xbf16> to vector<16x16xbf16>
    %76 = arith.truncf %73 : vector<16x256xf32> to vector<16x256xbf16>
    %cst_49 = arith.constant dense<0.000000e+00> : vector<16x256xf32>
    %77 = tpu.matmul %75, %76, %cst_49 {dimension_numbers = #tpu.dot_dimension_numbers<[1], [0], [0], [1], [0, 0, 1, 1], [], []>} : vector<16x16xbf16>, vector<16x256xbf16>, vector<16x256xf32> -> vector<16x256xf32>
    %78 = arith.addf %68, %77 : vector<16x256xf32>
    %c241_i32 = arith.constant 241 : i32
    %79 = tpu.dynamic_rotate %3 by %c241_i32 dim 1 : vector<16x256xf32>, i32 -> vector<16x256xf32>
    %c6 = arith.constant 6 : index
    %c0_50 = arith.constant 0 : index
    %c0_51 = arith.constant 0 : index
    %80 = vector.load %arg3[%c6, %c0_50, %c0_51] : memref<9x1x256xf32, #tpu.memory_space<vmem>>, vector<1x1x256xf32>
    %81 = vector.shape_cast %80 : vector<1x1x256xf32> to vector<1x256xf32>
    %82 = vector.broadcast %81 : vector<1x256xf32> to vector<16x256xf32>
    %83 = arith.mulf %79, %82 : vector<16x256xf32>
    %c6_52 = arith.constant 6 : index
    %c0_53 = arith.constant 0 : index
    %c0_54 = arith.constant 0 : index
    %84 = vector.load %arg4[%c6_52, %c0_53, %c0_54] : memref<9x16x16xbf16, #tpu.memory_space<vmem>>, vector<1x16x16xbf16>
    %85 = vector.shape_cast %84 : vector<1x16x16xbf16> to vector<16x16xbf16>
    %86 = arith.truncf %83 : vector<16x256xf32> to vector<16x256xbf16>
    %cst_55 = arith.constant dense<0.000000e+00> : vector<16x256xf32>
    %87 = tpu.matmul %85, %86, %cst_55 {dimension_numbers = #tpu.dot_dimension_numbers<[1], [0], [0], [1], [0, 0, 1, 1], [], []>} : vector<16x16xbf16>, vector<16x256xbf16>, vector<16x256xf32> -> vector<16x256xf32>
    %88 = arith.addf %78, %87 : vector<16x256xf32>
    %c240_i32 = arith.constant 240 : i32
    %89 = tpu.dynamic_rotate %3 by %c240_i32 dim 1 : vector<16x256xf32>, i32 -> vector<16x256xf32>
    %c7 = arith.constant 7 : index
    %c0_56 = arith.constant 0 : index
    %c0_57 = arith.constant 0 : index
    %90 = vector.load %arg3[%c7, %c0_56, %c0_57] : memref<9x1x256xf32, #tpu.memory_space<vmem>>, vector<1x1x256xf32>
    %91 = vector.shape_cast %90 : vector<1x1x256xf32> to vector<1x256xf32>
    %92 = vector.broadcast %91 : vector<1x256xf32> to vector<16x256xf32>
    %93 = arith.mulf %89, %92 : vector<16x256xf32>
    %c7_58 = arith.constant 7 : index
    %c0_59 = arith.constant 0 : index
    %c0_60 = arith.constant 0 : index
    %94 = vector.load %arg4[%c7_58, %c0_59, %c0_60] : memref<9x16x16xbf16, #tpu.memory_space<vmem>>, vector<1x16x16xbf16>
    %95 = vector.shape_cast %94 : vector<1x16x16xbf16> to vector<16x16xbf16>
    %96 = arith.truncf %93 : vector<16x256xf32> to vector<16x256xbf16>
    %cst_61 = arith.constant dense<0.000000e+00> : vector<16x256xf32>
    %97 = tpu.matmul %95, %96, %cst_61 {dimension_numbers = #tpu.dot_dimension_numbers<[1], [0], [0], [1], [0, 0, 1, 1], [], []>} : vector<16x16xbf16>, vector<16x256xbf16>, vector<16x256xf32> -> vector<16x256xf32>
    %98 = arith.addf %88, %97 : vector<16x256xf32>
    %c239_i32 = arith.constant 239 : i32
    %99 = tpu.dynamic_rotate %3 by %c239_i32 dim 1 : vector<16x256xf32>, i32 -> vector<16x256xf32>
    %c8 = arith.constant 8 : index
    %c0_62 = arith.constant 0 : index
    %c0_63 = arith.constant 0 : index
    %100 = vector.load %arg3[%c8, %c0_62, %c0_63] : memref<9x1x256xf32, #tpu.memory_space<vmem>>, vector<1x1x256xf32>
    %101 = vector.shape_cast %100 : vector<1x1x256xf32> to vector<1x256xf32>
    %102 = vector.broadcast %101 : vector<1x256xf32> to vector<16x256xf32>
    %103 = arith.mulf %99, %102 : vector<16x256xf32>
    %c8_64 = arith.constant 8 : index
    %c0_65 = arith.constant 0 : index
    %c0_66 = arith.constant 0 : index
    %104 = vector.load %arg4[%c8_64, %c0_65, %c0_66] : memref<9x16x16xbf16, #tpu.memory_space<vmem>>, vector<1x16x16xbf16>
    %105 = vector.shape_cast %104 : vector<1x16x16xbf16> to vector<16x16xbf16>
    %106 = arith.truncf %103 : vector<16x256xf32> to vector<16x256xbf16>
    %cst_67 = arith.constant dense<0.000000e+00> : vector<16x256xf32>
    %107 = tpu.matmul %105, %106, %cst_67 {dimension_numbers = #tpu.dot_dimension_numbers<[1], [0], [0], [1], [0, 0, 1, 1], [], []>} : vector<16x16xbf16>, vector<16x256xbf16>, vector<16x256xf32> -> vector<16x256xf32>
    %108 = arith.addf %98, %107 : vector<16x256xf32>
    %c0_68 = arith.constant 0 : index
    %c0_69 = arith.constant 0 : index
    %109 = vector.load %arg5[%c0_68, %c0_69] : memref<16x1xf32, #tpu.memory_space<vmem>>, vector<16x1xf32>
    %110 = vector.broadcast %109 : vector<16x1xf32> to vector<16x256xf32>
    %111 = arith.addf %108, %110 : vector<16x256xf32>
    %112 = arith.truncf %111 : vector<16x256xf32> to vector<16x256xbf16>
    %c0_70 = arith.constant 0 : index
    %c0_71 = arith.constant 0 : index
    %113 = vector.load %arg13[%c0_70, %c0_71] : memref<16x256xbf16, #tpu.memory_space<vmem>>, vector<16x256xbf16>
    tpu.vector_store %arg13[%c0_70, %c0_71], %112 {strides = array<i32>} : memref<16x256xbf16, #tpu.memory_space<vmem>>, vector<16x256xbf16>,
    %c0_72 = arith.constant 0 : index
    %114 = arith.index_cast %1 : i32 to index
    %115 = vector.load %arg13[%c0_72, %114] : memref<16x256xbf16, #tpu.memory_space<vmem>>, vector<16x128xbf16>
    %cst_73 = arith.constant dense<0.000000e+00> : vector<256x128xf32>
    %116 = tpu.matmul %112, %115, %cst_73 {dimension_numbers = #tpu.dot_dimension_numbers<[0], [0], [1], [1], [0, 1, 1, 1], [], []>} : vector<16x256xbf16>, vector<16x128xbf16>, vector<256x128xf32> -> vector<256x128xf32>
    %cst_74 = arith.constant dense<0xFF800000> : vector<128xf32>
    %117 = vector.multi_reduction <maximumf>, %116, %cst_74 [0] : vector<256x128xf32> to vector<128xf32>
    %118 = vector.shape_cast %117 : vector<128xf32> to vector<1x128xf32>
    %119 = vector.broadcast %118 : vector<1x128xf32> to vector<256x128xf32>
    %120 = arith.subf %116, %119 : vector<256x128xf32>
    %121 = math.exp %120 : vector<256x128xf32>
    %cst_75 = arith.constant dense<0.000000e+00> : vector<128xf32>
    %122 = vector.multi_reduction <add>, %121, %cst_75 [0] : vector<256x128xf32> to vector<128xf32>
    %123 = vector.shape_cast %122 : vector<128xf32> to vector<1x128xf32>
    %124 = tpu.reciprocal %123 {approx = true} : vector<1x128xf32> -> vector<1x128xf32>
    %125 = arith.truncf %121 : vector<256x128xf32> to vector<256x128xbf16>
    %cst_76 = arith.constant dense<0.000000e+00> : vector<16x128xf32>
    %126 = tpu.matmul %112, %125, %cst_76 {dimension_numbers = #tpu.dot_dimension_numbers<[1], [0], [0], [1], [0, 0, 1, 1], [], []>} : vector<16x256xbf16>, vector<256x128xbf16>, vector<16x128xf32> -> vector<16x128xf32>
    %127 = vector.broadcast %124 : vector<1x128xf32> to vector<16x128xf32>
    %128 = arith.mulf %126, %127 : vector<16x128xf32>
    %c0_77 = arith.constant 0 : index
    %c0_78 = arith.constant 0 : index
    %129 = arith.index_cast %1 : i32 to index
    %130 = vector.load %arg2[%c0_77, %c0_78, %129] : memref<1x16x256xf32, #tpu.memory_space<vmem>>, vector<1x16x128xf32>
    %131 = vector.shape_cast %130 : vector<1x16x128xf32> to vector<16x128xf32>
    %132 = vector.broadcast %22 : vector<16x1xf32> to vector<16x128xf32>
    %133 = arith.mulf %131, %132 : vector<16x128xf32>
    %134 = arith.truncf %133 : vector<16x128xf32> to vector<16x128xbf16>
    %c0_79 = arith.constant 0 : index
    %c0_80 = arith.constant 0 : index
    %135 = vector.load %arg14[%c0_79, %c0_80] : memref<32x128xbf16, #tpu.memory_space<vmem>>, vector<16x128xbf16>
    tpu.vector_store %arg14[%c0_79, %c0_80], %134 {strides = array<i32>} : memref<32x128xbf16, #tpu.memory_space<vmem>>, vector<16x128xbf16>,
    %136 = arith.truncf %128 : vector<16x128xf32> to vector<16x128xbf16>
    %c16 = arith.constant 16 : index
    %c0_81 = arith.constant 0 : index
    %137 = vector.load %arg14[%c16, %c0_81] : memref<32x128xbf16, #tpu.memory_space<vmem>>, vector<16x128xbf16>
    tpu.vector_store %arg14[%c16, %c0_81], %136 {strides = array<i32>} : memref<32x128xbf16, #tpu.memory_space<vmem>>, vector<16x128xbf16>,
    %c0_82 = arith.constant 0 : index
    %c0_83 = arith.constant 0 : index
    %138 = vector.load %arg10[%c0_82, %c0_83] : memref<16x32xbf16, #tpu.memory_space<vmem>>, vector<16x32xbf16>
    %c0_84 = arith.constant 0 : index
    %c0_85 = arith.constant 0 : index
    %139 = vector.load %arg14[%c0_84, %c0_85] : memref<32x128xbf16, #tpu.memory_space<vmem>>, vector<32x128xbf16>
    %cst_86 = arith.constant dense<0.000000e+00> : vector<16x128xf32>
    %140 = tpu.matmul %138, %139, %cst_86 {dimension_numbers = #tpu.dot_dimension_numbers<[1], [0], [0], [1], [0, 0, 1, 1], [], []>} : vector<16x32xbf16>, vector<32x128xbf16>, vector<16x128xf32> -> vector<16x128xf32>
    %c0_87 = arith.constant 0 : index
    %c0_88 = arith.constant 0 : index
    %141 = vector.load %arg11[%c0_87, %c0_88] : memref<16x1xf32, #tpu.memory_space<vmem>>, vector<16x1xf32>
    %142 = vector.broadcast %141 : vector<16x1xf32> to vector<16x128xf32>
    %143 = arith.addf %140, %142 : vector<16x128xf32>
    %144 = arith.addf %143, %131 : vector<16x128xf32>
    %c0_89 = arith.constant 0 : index
    %c0_90 = arith.constant 0 : index
    %c0_91 = arith.constant 0 : index
    %145 = vector.load %arg12[%c0_89, %c0_90, %c0_91] : memref<1x16x128xf32, #tpu.memory_space<vmem>>, vector<1x16x128xf32>
    %146 = vector.shape_cast %145 : vector<1x16x128xf32> to vector<16x128xf32>
    %147 = vector.shape_cast %144 : vector<16x128xf32> to vector<1x16x128xf32>
    tpu.vector_store %arg12[%c0_89, %c0_90, %c0_91], %147 {strides = array<i32>} : memref<1x16x128xf32, #tpu.memory_space<vmem>>, vector<1x16x128xf32>,
    return
  }
  func.func @transform_0(%arg0: i32, %arg1: i32) -> (i32, i32, i32) {
    %c0_i32 = arith.constant 0 : i32
    %c0_i32_0 = arith.constant 0 : i32
    %c0_i32_1 = arith.constant 0 : i32
    return %arg0, %c0_i32, %c0_i32_0 : i32, i32, i32
  }
  func.func @transform_1(%arg0: i32, %arg1: i32) -> (i32, i32, i32) {
    %c0_i32 = arith.constant 0 : i32
    %c0_i32_0 = arith.constant 0 : i32
    %c0_i32_1 = arith.constant 0 : i32
    %c0_i32_2 = arith.constant 0 : i32
    return %c0_i32, %c0_i32_0, %c0_i32_1 : i32, i32, i32
  }
  func.func @transform_2(%arg0: i32, %arg1: i32) -> (i32, i32, i32) {
    %c0_i32 = arith.constant 0 : i32
    %c0_i32_0 = arith.constant 0 : i32
    %c0_i32_1 = arith.constant 0 : i32
    %c0_i32_2 = arith.constant 0 : i32
    return %c0_i32, %c0_i32_0, %c0_i32_1 : i32, i32, i32
  }
  func.func @transform_3(%arg0: i32, %arg1: i32) -> (i32, i32) {
    %c0_i32 = arith.constant 0 : i32
    %c0_i32_0 = arith.constant 0 : i32
    %c0_i32_1 = arith.constant 0 : i32
    return %c0_i32, %c0_i32_0 : i32, i32
  }
  func.func @transform_4(%arg0: i32, %arg1: i32) -> (i32, i32) {
    %c0_i32 = arith.constant 0 : i32
    %c0_i32_0 = arith.constant 0 : i32
    %c0_i32_1 = arith.constant 0 : i32
    return %c0_i32, %c0_i32_0 : i32, i32
  }
  func.func @transform_5(%arg0: i32, %arg1: i32) -> (i32, i32) {
    %c0_i32 = arith.constant 0 : i32
    %c0_i32_0 = arith.constant 0 : i32
    %c0_i32_1 = arith.constant 0 : i32
    return %c0_i32, %c0_i32_0 : i32, i32
  }
  func.func @transform_6(%arg0: i32, %arg1: i32) -> (i32, i32) {
    %c0_i32 = arith.constant 0 : i32
    %c0_i32_0 = arith.constant 0 : i32
    %c0_i32_1 = arith.constant 0 : i32
    return %c0_i32, %c0_i32_0 : i32, i32
  }
  func.func @transform_7(%arg0: i32, %arg1: i32) -> (i32, i32) {
    %c0_i32 = arith.constant 0 : i32
    %c0_i32_0 = arith.constant 0 : i32
    %c0_i32_1 = arith.constant 0 : i32
    return %c0_i32, %c0_i32_0 : i32, i32
  }
  func.func @transform_8(%arg0: i32, %arg1: i32) -> (i32, i32) {
    %c0_i32 = arith.constant 0 : i32
    %c0_i32_0 = arith.constant 0 : i32
    %c0_i32_1 = arith.constant 0 : i32
    return %c0_i32, %c0_i32_0 : i32, i32
  }
  func.func @transform_9(%arg0: i32, %arg1: i32) -> (i32, i32) {
    %c0_i32 = arith.constant 0 : i32
    %c0_i32_0 = arith.constant 0 : i32
    %c0_i32_1 = arith.constant 0 : i32
    return %c0_i32, %c0_i32_0 : i32, i32
  }
  func.func @transform_10(%arg0: i32, %arg1: i32) -> (i32, i32, i32) {
    %c0_i32 = arith.constant 0 : i32
    %c0_i32_0 = arith.constant 0 : i32
    return %arg0, %c0_i32, %arg1 : i32, i32, i32
  }
}

</mosaic_0001>

<llo_original>
// kernel: tpu_custom_call.1
$region0: #{tpu_custom_call.1}
  #allocation0 [shape = 'u32[]', space=smem, size = 0x4, offset = 0x4, fixed_abs, tag = 'smem constant byte address 0x4 - core index']
  #allocation1 [shape = 'u32[144,128]{1,0:T(1,128)}', space=vmem, size = 0x12000, scoped, tag = 'internal scratch']
  #allocation2 [shape = 'bf16[16,256]{1,0:T(16,128)(2,1)}', space=vmem, size = 0x2000, scoped, tag = 'scratch operand']
  #allocation3 [shape = 'bf16[32,128]{1,0:T(16,128)(2,1)}', space=vmem, size = 0x2000, scoped, tag = 'scratch operand']
  #allocation4 [shape = 'f32[1,1]{1,0:T(1,128)S(1)}', space=vmem, size = 0x200, scoped, tag = 'scoped memory for tpu_custom_call.1']
  %s0 = inlined_call_operand.hbm [shape: f32[2,16,256], index: 0, kind: input, shape index: {}]
  %s1 = inlined_call_operand.hbm [shape: f32[9,1,256], index: 1, kind: input, shape index: {}]
  %s2 = inlined_call_operand.vmem [shape: bf16[9,16,16], index: 2, kind: input, shape index: {}]
  %s3 = inlined_call_operand.vmem [shape: f32[16,1], index: 3, kind: input, shape index: {}]
  %s4 = inlined_call_operand.vmem [shape: f32[1,16], index: 4, kind: input, shape index: {}]
  %s5 = inlined_call_operand.<no memory space> [shape: f32[1,1], index: 5, kind: input, shape index: {}]
  %s6 = inlined_call_operand.vmem [shape: f32[16,1], index: 6, kind: input, shape index: {}]
  %s7 = inlined_call_operand.vmem [shape: f32[16,1], index: 7, kind: input, shape index: {}]
  %s8 = inlined_call_operand.vmem [shape: bf16[16,32], index: 8, kind: input, shape index: {}]
  %s9 = inlined_call_operand.vmem [shape: f32[16,1], index: 9, kind: input, shape index: {}]
  %s10 = inlined_call_operand.hbm [shape: f32[2,16,256], index: 10, kind: output, shape index: {}]
  %s11 = sld [smem:[#allocation0]]
  $region81: #{tpu_custom_call.1} parent=0
    _
  %s13 = ssub.s32 1, %s11
  %s14 = scalar_select 0, %s13, %s11
  %v15 = vstv %s5
  %16 = vst [vmem:[#allocation4] sm:$0x1] %v15
  $region1: #{tpu_custom_call.1} parent=0
    #allocation5 [shape = 'u8[32768]{0}', space=vmem, size = 0x8000, scoped, tag = 'input window, operand 0']
    #allocation6 [shape = 's32[2]{0}', space=sflag, size = 0x8, scoped, tag = 'scoped memory for tpu_custom_call.1']
    #allocation7 [shape = 's32[2]{0}', space=sflag, size = 0x8, scoped, tag = 'scoped memory for tpu_custom_call.1']
    #allocation8 [shape = 'u8[9216]{0}', space=vmem, size = 0x2400, scoped, tag = 'input window, operand 1, single buffered']
    #allocation9 [shape = 's32[1]{0}', space=sflag, size = 0x4, scoped, tag = 'scoped memory for tpu_custom_call.1']
    #allocation10 [shape = 'u8[16384]{0}', space=vmem, size = 0x4000, scoped, tag = 'output window, operand 0']
    %17 = vsyncpa [#allocation6], 0
    %s18 = scalar_lea.sflag [#allocation6], 1
    %19 = vsyncpa %s18, 0
    %20 = vsyncpa [#allocation9], 0
    %21 = vsyncpa [#allocation7], 0
    %s22 = scalar_lea.sflag [#allocation7], 1
    %23 = vsyncpa %s22, 0
    loop: start=0, step=1, limit=6
    $region2: #{tpu_custom_call.1} parent=1 // loop_pre_header
      _
    $region3: #{tpu_custom_call.1} parent=1 // loop_header
      %s25 = sphi 0, %s29
      %p26 = scmp.ge.s32.totalorder %s25, 6
      %s32 = sphi 0, %s44
      %s33 = sphi 0, %s40
      %s34 = sphi 0, %s32
      %s35 = sphi 0, %s33
      %s36 = sphi 0, %s34
      %s37 = sphi 0, %s35
      %s47 = sphi 0, %s49
      %s50 = sphi 0, %s47
      %s51 = sphi 0, %s50
      %s67 = sphi 0, %s51
      %s71 = sphi 0, %s71
      %s73 = sphi 0, %s71
      %s74 = sphi 0, %s73
      %s88 = sphi 0, %s74
      %s92 = sphi 0, %s92
      %s94 = sphi 0, %s92
      %s95 = sphi 0, %s94
      %s109 = sphi 0, %s95
      %s113 = sphi 0, %s113
      %s115 = sphi 0, %s113
      %s116 = sphi 0, %s115
      %s130 = sphi 0, %s116
      %s134 = sphi 0, %s134
      %s136 = sphi 0, %s134
      %s137 = sphi 0, %s136
      %s151 = sphi 0, %s137
      %s155 = sphi 0, %s155
      %s157 = sphi 0, %s155
      %s158 = sphi 0, %s157
      %s172 = sphi 0, %s158
      %s176 = sphi 0, %s176
      %s178 = sphi 0, %s176
      %s179 = sphi 0, %s178
      %s193 = sphi 0, %s179
      %s197 = sphi 0, %s197
      %s199 = sphi 0, %s197
      %s200 = sphi 0, %s199
      %s214 = sphi 0, %s200
      %s218 = sphi 0, %s218
      %s220 = sphi 0, %s218
      %s221 = sphi 0, %s220
      %s235 = sphi 0, %s221
      %s239 = sphi 0, %s239
      %s241 = sphi 0, %s239
      %s242 = sphi 0, %s241
      %s256 = sphi 0, %s242
      %s264 = sphi 0, %s266
      %s267 = sphi 0, %s264
      %s268 = sphi 0, %s267
      %s284 = sphi 0, %s268
    $region4: #{tpu_custom_call.1} parent=1 // loop_header_branch
      %28 = sbr.rel (%p26) target = $region8
    $region5: #{tpu_custom_call.1} parent=1 // loop_body
      %s30 = ssub.s32 %s25, 1
      %s31 = ssub.s32 %s25, 2
      %s38 = sadd.s32 1, %s33
      %p39 = scmp.ge.s32.totalorder %s38, 2
      %s40 = scalar_select %p39, 0, %s38
      %s41 = sadd.s32 1, %s32
      %s42 = scalar_select %p39, %s41, %s32
      %p43 = scmp.ge.s32.totalorder %s42, 2
      %s44 = scalar_select %p43, 0, %s42
      %s45 = ssub.s32 %s32, %s44
      %p46 = scmp.eq.s32.totalorder %s45, 0
      %s48 = sadd.s32 %s47, 1
      %s49 = scalar_select %p46, %s47, %s48
      %p52 = pneg %p46
      %p53 = scmp.eq.s32.totalorder %s25, 3
      %p54 = por %p52, %p53
      %p55 = scmp.ne.s32.totalorder %s47, %s50
      %p56 = scmp.eq.s32.totalorder %s25, 0
      %p57 = por %p55, %p56
      %p58 = scmp.ne.s32.totalorder %s47, %s50
      %p59 = scmp.eq.s32.totalorder %s30, 3
      %p60 = por %p58, %p59
      %p61 = scmp.ne.s32.totalorder %s50, %s51
      %p62 = scmp.eq.s32.totalorder %s30, 0
      %p63 = por %p61, %p62
      %p64 = scmp.ne.s32.totalorder %s50, %s51
      %p65 = scmp.eq.s32.totalorder %s31, 3
      %p66 = por %p64, %p65
      %p68 = scmp.ne.s32.totalorder %s51, %s67
      %p69 = scmp.eq.s32.totalorder %s31, 0
      %p70 = por %p68, %p69
      %s72 = sadd.s32 %s71, 1
      %p75 = scmp.eq.s32.totalorder %s25, 3
      %p76 = scmp.ne.s32.totalorder %s71, %s73
      %p77 = scmp.eq.s32.totalorder %s25, 0
      %p78 = por %p76, %p77
      %p79 = scmp.ne.s32.totalorder %s71, %s73
      %p80 = scmp.eq.s32.totalorder %s30, 3
      %p81 = por %p79, %p80
      %p82 = scmp.ne.s32.totalorder %s73, %s74
      %p83 = scmp.eq.s32.totalorder %s30, 0
      %p84 = por %p82, %p83
      %p85 = scmp.ne.s32.totalorder %s73, %s74
      %p86 = scmp.eq.s32.totalorder %s31, 3
      %p87 = por %p85, %p86
      %p89 = scmp.ne.s32.totalorder %s74, %s88
      %p90 = scmp.eq.s32.totalorder %s31, 0
      %p91 = por %p89, %p90
      %s93 = sadd.s32 %s92, 1
      %p96 = scmp.eq.s32.totalorder %s25, 3
      %p97 = scmp.ne.s32.totalorder %s92, %s94
      %p98 = scmp.eq.s32.totalorder %s25, 0
      %p99 = por %p97, %p98
      %p100 = scmp.ne.s32.totalorder %s92, %s94
      %p101 = scmp.eq.s32.totalorder %s30, 3
      %p102 = por %p100, %p101
      %p103 = scmp.ne.s32.totalorder %s94, %s95
      %p104 = scmp.eq.s32.totalorder %s30, 0
      %p105 = por %p103, %p104
      %p106 = scmp.ne.s32.totalorder %s94, %s95
      %p107 = scmp.eq.s32.totalorder %s31, 3
      %p108 = por %p106, %p107
      %p110 = scmp.ne.s32.totalorder %s95, %s109
      %p111 = scmp.eq.s32.totalorder %s31, 0
      %p112 = por %p110, %p111
      %s114 = sadd.s32 %s113, 1
      %p117 = scmp.eq.s32.totalorder %s25, 3
      %p118 = scmp.ne.s32.totalorder %s113, %s115
      %p119 = scmp.eq.s32.totalorder %s25, 0
      %p120 = por %p118, %p119
      %p121 = scmp.ne.s32.totalorder %s113, %s115
      %p122 = scmp.eq.s32.totalorder %s30, 3
      %p123 = por %p121, %p122
      %p124 = scmp.ne.s32.totalorder %s115, %s116
      %p125 = scmp.eq.s32.totalorder %s30, 0
      %p126 = por %p124, %p125
      %p127 = scmp.ne.s32.totalorder %s115, %s116
      %p128 = scmp.eq.s32.totalorder %s31, 3
      %p129 = por %p127, %p128
      %p131 = scmp.ne.s32.totalorder %s116, %s130
      %p132 = scmp.eq.s32.totalorder %s31, 0
      %p133 = por %p131, %p132
      %s135 = sadd.s32 %s134, 1
      %p138 = scmp.eq.s32.totalorder %s25, 3
      %p139 = scmp.ne.s32.totalorder %s134, %s136
      %p140 = scmp.eq.s32.totalorder %s25, 0
      %p141 = por %p139, %p140
      %p142 = scmp.ne.s32.totalorder %s134, %s136
      %p143 = scmp.eq.s32.totalorder %s30, 3
      %p144 = por %p142, %p143
      %p145 = scmp.ne.s32.totalorder %s136, %s137
      %p146 = scmp.eq.s32.totalorder %s30, 0
      %p147 = por %p145, %p146
      %p148 = scmp.ne.s32.totalorder %s136, %s137
      %p149 = scmp.eq.s32.totalorder %s31, 3
      %p150 = por %p148, %p149
      %p152 = scmp.ne.s32.totalorder %s137, %s151
      %p153 = scmp.eq.s32.totalorder %s31, 0
      %p154 = por %p152, %p153
      %s156 = sadd.s32 %s155, 1
      %p159 = scmp.eq.s32.totalorder %s25, 3
      %p160 = scmp.ne.s32.totalorder %s155, %s157
      %p161 = scmp.eq.s32.totalorder %s25, 0
      %p162 = por %p160, %p161
      %p163 = scmp.ne.s32.totalorder %s155, %s157
      %p164 = scmp.eq.s32.totalorder %s30, 3
      %p165 = por %p163, %p164
      %p166 = scmp.ne.s32.totalorder %s157, %s158
      %p167 = scmp.eq.s32.totalorder %s30, 0
      %p168 = por %p166, %p167
      %p169 = scmp.ne.s32.totalorder %s157, %s158
      %p170 = scmp.eq.s32.totalorder %s31, 3
      %p171 = por %p169, %p170
      %p173 = scmp.ne.s32.totalorder %s158, %s172
      %p174 = scmp.eq.s32.totalorder %s31, 0
      %p175 = por %p173, %p174
      %s177 = sadd.s32 %s176, 1
      %p180 = scmp.eq.s32.totalorder %s25, 3
      %p181 = scmp.ne.s32.totalorder %s176, %s178
      %p182 = scmp.eq.s32.totalorder %s25, 0
      %p183 = por %p181, %p182
      %p184 = scmp.ne.s32.totalorder %s176, %s178
      %p185 = scmp.eq.s32.totalorder %s30, 3
      %p186 = por %p184, %p185
      %p187 = scmp.ne.s32.totalorder %s178, %s179
      %p188 = scmp.eq.s32.totalorder %s30, 0
      %p189 = por %p187, %p188
      %p190 = scmp.ne.s32.totalorder %s178, %s179
      %p191 = scmp.eq.s32.totalorder %s31, 3
      %p192 = por %p190, %p191
      %p194 = scmp.ne.s32.totalorder %s179, %s193
      %p195 = scmp.eq.s32.totalorder %s31, 0
      %p196 = por %p194, %p195
      %s198 = sadd.s32 %s197, 1
      %p201 = scmp.eq.s32.totalorder %s25, 3
      %p202 = scmp.ne.s32.totalorder %s197, %s199
      %p203 = scmp.eq.s32.totalorder %s25, 0
      %p204 = por %p202, %p203
      %p205 = scmp.ne.s32.totalorder %s197, %s199
      %p206 = scmp.eq.s32.totalorder %s30, 3
      %p207 = por %p205, %p206
      %p208 = scmp.ne.s32.totalorder %s199, %s200
      %p209 = scmp.eq.s32.totalorder %s30, 0
      %p210 = por %p208, %p209
      %p211 = scmp.ne.s32.totalorder %s199, %s200
      %p212 = scmp.eq.s32.totalorder %s31, 3
      %p213 = por %p211, %p212
      %p215 = scmp.ne.s32.totalorder %s200, %s214
      %p216 = scmp.eq.s32.totalorder %s31, 0
      %p217 = por %p215, %p216
      %s219 = sadd.s32 %s218, 1
      %p222 = scmp.eq.s32.totalorder %s25, 3
      %p223 = scmp.ne.s32.totalorder %s218, %s220
      %p224 = scmp.eq.s32.totalorder %s25, 0
      %p225 = por %p223, %p224
      %p226 = scmp.ne.s32.totalorder %s218, %s220
      %p227 = scmp.eq.s32.totalorder %s30, 3
      %p228 = por %p226, %p227
      %p229 = scmp.ne.s32.totalorder %s220, %s221
      %p230 = scmp.eq.s32.totalorder %s30, 0
      %p231 = por %p229, %p230
      %p232 = scmp.ne.s32.totalorder %s220, %s221
      %p233 = scmp.eq.s32.totalorder %s31, 3
      %p234 = por %p232, %p233
      %p236 = scmp.ne.s32.totalorder %s221, %s235
      %p237 = scmp.eq.s32.totalorder %s31, 0
      %p238 = por %p236, %p237
      %s240 = sadd.s32 %s239, 1
      %p243 = scmp.eq.s32.totalorder %s25, 3
      %p244 = scmp.ne.s32.totalorder %s239, %s241
      %p245 = scmp.eq.s32.totalorder %s25, 0
      %p246 = por %p244, %p245
      %p247 = scmp.ne.s32.totalorder %s239, %s241
      %p248 = scmp.eq.s32.totalorder %s30, 3
      %p249 = por %p247, %p248
      %p250 = scmp.ne.s32.totalorder %s241, %s242
      %p251 = scmp.eq.s32.totalorder %s30, 0
      %p252 = por %p250, %p251
      %p253 = scmp.ne.s32.totalorder %s241, %s242
      %p254 = scmp.eq.s32.totalorder %s31, 3
      %p255 = por %p253, %p254
      %p257 = scmp.ne.s32.totalorder %s242, %s256
      %p258 = scmp.eq.s32.totalorder %s31, 0
      %p259 = por %p257, %p258
      %s260 = ssub.s32 %s32, %s44
      %s261 = ssub.s32 %s33, %s40
      %s262 = sor.u32 %s260, %s261
      %p263 = scmp.eq.s32.totalorder %s262, 0
      %s265 = sadd.s32 %s264, 1
      %s266 = scalar_select %p263, %s264, %s265
      %p269 = pneg %p263
      %p270 = scmp.eq.s32.totalorder %s25, 3
      %p271 = por %p269, %p270
      %p272 = scmp.ne.s32.totalorder %s264, %s267
      %p273 = scmp.eq.s32.totalorder %s25, 0
      %p274 = por %p272, %p273
      %p275 = scmp.ne.s32.totalorder %s264, %s267
      %p276 = scmp.eq.s32.totalorder %s30, 3
      %p277 = por %p275, %p276
      %p278 = scmp.ne.s32.totalorder %s267, %s268
      %p279 = scmp.eq.s32.totalorder %s30, 0
      %p280 = por %p278, %p279
      %p281 = scmp.ne.s32.totalorder %s267, %s268
      %p282 = scmp.eq.s32.totalorder %s31, 3
      %p283 = por %p281, %p282
      %p285 = scmp.ne.s32.totalorder %s268, %s284
      %p286 = scmp.eq.s32.totalorder %s31, 0
      %p287 = por %p285, %p286
      %p288 = scmp.le.s32.totalorder 1, %s25
      %p289 = scmp.lt.s32.totalorder %s25, 5
      %p290 = pnand %p288, %p289
      %p291 = pneg %p290
      // Predicated region
      $region9: #{tpu_custom_call.1} parent=5 // pred_check
        _
      $region10: #{tpu_custom_call.1} parent=5 // pred_check_branch
        %293 = sbr.rel (%p290) target = $region12
      $region11: #{tpu_custom_call.1} parent=5 // pred_region
        %s294 = ssub.s32 %s25, 1
        // Predicated region
        $region13: #{tpu_custom_call.1} parent=11 // pred_check
          %p295 = pneg %p84
        $region14: #{tpu_custom_call.1} parent=11 // pred_check_branch
          %297 = sbr.rel (%p295) target = $region16
        $region15: #{tpu_custom_call.1} parent=11 // pred_region
          %s299 = ssub.s32 288, 288
          %300 = vsyncadd [#allocation9], %s299
          %s301 = sshll.u32 [#allocation8], 4
          %s302 = int_to_ptr.vmem [resolvable:$true] %s301
          %307 = dma.hbm_to_vmem [thread:$0]  %s1, 288, %s302, [#allocation9], 32, 32, 2
        $region16: #{tpu_custom_call.1} parent=11 // pred_fallthru
          _
        // Predicated region
        $region17: #{tpu_custom_call.1} parent=11 // pred_check
          %p308 = pneg %p105
        $region18: #{tpu_custom_call.1} parent=11 // pred_check_branch
          %310 = sbr.rel (%p308) target = $region20
        $region19: #{tpu_custom_call.1} parent=11 // pred_region
          _
        $region20: #{tpu_custom_call.1} parent=11 // pred_fallthru
          _
        // Predicated region
        $region21: #{tpu_custom_call.1} parent=11 // pred_check
          %p311 = pneg %p126
        $region22: #{tpu_custom_call.1} parent=11 // pred_check_branch
          %313 = sbr.rel (%p311) target = $region24
        $region23: #{tpu_custom_call.1} parent=11 // pred_region
          _
        $region24: #{tpu_custom_call.1} parent=11 // pred_fallthru
          _
        // Predicated region
        $region25: #{tpu_custom_call.1} parent=11 // pred_check
          %p314 = pneg %p147
        $region26: #{tpu_custom_call.1} parent=11 // pred_check_branch
          %316 = sbr.rel (%p314) target = $region28
        $region27: #{tpu_custom_call.1} parent=11 // pred_region
          _
        $region28: #{tpu_custom_call.1} parent=11 // pred_fallthru
          _
        // Predicated region
        $region29: #{tpu_custom_call.1} parent=11 // pred_check
          %p317 = pneg %p168
        $region30: #{tpu_custom_call.1} parent=11 // pred_check_branch
          %319 = sbr.rel (%p317) target = $region32
        $region31: #{tpu_custom_call.1} parent=11 // pred_region
          _
        $region32: #{tpu_custom_call.1} parent=11 // pred_fallthru
          _
        // Predicated region
        $region33: #{tpu_custom_call.1} parent=11 // pred_check
          %p320 = pneg %p189
        $region34: #{tpu_custom_call.1} parent=11 // pred_check_branch
          %322 = sbr.rel (%p320) target = $region36
        $region35: #{tpu_custom_call.1} parent=11 // pred_region
          _
        $region36: #{tpu_custom_call.1} parent=11 // pred_fallthru
          _
        // Predicated region
        $region37: #{tpu_custom_call.1} parent=11 // pred_check
          %p323 = pneg %p210
        $region38: #{tpu_custom_call.1} parent=11 // pred_check_branch
          %325 = sbr.rel (%p323) target = $region40
        $region39: #{tpu_custom_call.1} parent=11 // pred_region
          _
        $region40: #{tpu_custom_call.1} parent=11 // pred_fallthru
          _
        // Predicated region
        $region41: #{tpu_custom_call.1} parent=11 // pred_check
          %p326 = pneg %p231
        $region42: #{tpu_custom_call.1} parent=11 // pred_check_branch
          %328 = sbr.rel (%p326) target = $region44
        $region43: #{tpu_custom_call.1} parent=11 // pred_region
          _
        $region44: #{tpu_custom_call.1} parent=11 // pred_fallthru
          _
        // Predicated region
        $region45: #{tpu_custom_call.1} parent=11 // pred_check
          %p329 = pneg %p252
        $region46: #{tpu_custom_call.1} parent=11 // pred_check_branch
          %331 = sbr.rel (%p329) target = $region48
        $region47: #{tpu_custom_call.1} parent=11 // pred_region
          _
        $region48: #{tpu_custom_call.1} parent=11 // pred_fallthru
          _
      $region12: #{tpu_custom_call.1} parent=5 // pred_fallthru
        _
      %p332 = scmp.lt.s32.totalorder %s25, 4
      // Predicated region
      $region49: #{tpu_custom_call.1} parent=5 // pred_check
        %p333 = pneg %p332
      $region50: #{tpu_custom_call.1} parent=5 // pred_check_branch
        %335 = sbr.rel (%p333) target = $region52
      $region51: #{tpu_custom_call.1} parent=5 // pred_region
        // Predicated region
        $region53: #{tpu_custom_call.1} parent=51 // pred_check
          %p336 = pneg %p57
        $region54: #{tpu_custom_call.1} parent=51 // pred_check_branch
          %338 = sbr.rel (%p336) target = $region56
        $region55: #{tpu_custom_call.1} parent=51 // pred_region
          %s339 = sand.u32 %s47, 1
          %s340 = scalar_lea.sflag [#allocation6], %s339
          %s341 = sand.u32 %s47, 1
          %s342 = smul.addr %s341, 32
          %s343 = scalar_lea.vmem [#allocation5], %s342
          %s345 = ssub.s32 512, 512
          %346 = vsyncadd %s340, %s345
          %s347 = smul.addr %s32, 4
          %s348 = smul.addr %s347, 128
          %s349 = scalar_lea.hbm %s0, %s348
          %s350 = sshll.u32 %s343, 4
          %s351 = int_to_ptr.vmem [resolvable:$true] %s350
          %356 = dma.hbm_to_vmem [thread:$0]  %s349, 512, %s351, %s340, 256, 256, 16
        $region56: #{tpu_custom_call.1} parent=51 // pred_fallthru
          _
      $region52: #{tpu_custom_call.1} parent=5 // pred_fallthru
        _
      %p357 = scmp.le.s32.totalorder 1, %s25
      %p358 = scmp.lt.s32.totalorder %s25, 5
      %p359 = pnand %p357, %p358
      %p360 = pneg %p359
      // Predicated region
      $region57: #{tpu_custom_call.1} parent=5 // pred_check
        _
      $region58: #{tpu_custom_call.1} parent=5 // pred_check_branch
        %362 = sbr.rel (%p359) target = $region60
      $region59: #{tpu_custom_call.1} parent=5 // pred_region
        %s363 = ssub.s32 %s25, 1
        %s364 = sand.u32 %s50, 1
        %s365 = scalar_lea.sflag [#allocation6], %s364
        %s366 = sand.u32 %s50, 1
        %s367 = smul.addr %s366, 32
        %s368 = scalar_lea.vmem [#allocation5], %s367
        // Predicated region
        $region61: #{tpu_custom_call.1} parent=59 // pred_check
          %p369 = pneg %p63
        $region62: #{tpu_custom_call.1} parent=59 // pred_check_branch
          %371 = sbr.rel (%p369) target = $region64
        $region63: #{tpu_custom_call.1} parent=59 // pred_region
          %372 = dma.done %s365, 512
        $region64: #{tpu_custom_call.1} parent=59 // pred_fallthru
          _
        // Predicated region
        $region65: #{tpu_custom_call.1} parent=59 // pred_check
          %p373 = pneg %p84
        $region66: #{tpu_custom_call.1} parent=59 // pred_check_branch
          %375 = sbr.rel (%p373) target = $region68
        $region67: #{tpu_custom_call.1} parent=59 // pred_region
          %376 = dma.done [#allocation9], 288
        $region68: #{tpu_custom_call.1} parent=59 // pred_fallthru
          _
        %s377 = sand.u32 %s50, 1
        %s378 = scalar_lea.sflag [#allocation6], %s377
        %s379 = sand.u32 %s50, 1
        %s380 = smul.addr %s379, 32
        %s381 = scalar_lea.vmem [#allocation5], %s380
        %p382 = pneg %p63
        %p383 = pneg %p60
        %p384 = pneg %p84
        %p385 = pneg %p81
        %p386 = pneg %p105
        %p387 = pneg %p102
        %p388 = pneg %p126
        %p389 = pneg %p123
        %p390 = pneg %p147
        %p391 = pneg %p144
        %p392 = pneg %p168
        %p393 = pneg %p165
        %p394 = pneg %p189
        %p395 = pneg %p186
        %p396 = pneg %p210
        %p397 = pneg %p207
        %p398 = pneg %p231
        %p399 = pneg %p228
        %p400 = pneg %p252
        %p401 = pneg %p249
        %p402 = pneg %p280
        %p403 = pneg %p277
        %s404 = sand.u32 %s267, 1
        %s405 = scalar_lea.sflag [#allocation7], %s404
        %s406 = sand.u32 %s267, 1
        %s407 = smul.addr %s406, 16
        %s408 = scalar_lea.vmem [#allocation10], %s407
        %s410 = smul.u32 %s35, 128
        %v411 = vld [vmem:[%s368] sm:$0xff]
        %v412 = vld [vmem:[%s368 + $0x8] sm:$0xff]
        %v413 = vld [vmem:[%s368 + $0x10] sm:$0xff]
        %v414 = vld [vmem:[%s368 + $0x18] sm:$0xff]
        %v415 = vadd.f32 %v411, %v412
        %416 = vadd.xlane.f32.xlu0 %v415
        %v417 = vpop.xlane.xlu0 %416
        %v418 = vadd.f32 %v413, %v414
        %419 = vadd.xlane.f32.xlu0 %v418
        %v420 = vpop.xlane.xlu0 %419
        %v421 = vrcp.pop 256.0
        %v422 = vmul.f32 %v417, %v421
        %v423 = vmul.f32 %v420, %v421
        %v424 = vld [vmem:[%s4] sm:$0x1]
        %v425 = vld [vmem:[#allocation4] sm:$0x1]
        %vm426 = vcmask 130048
        %v428 = vsel %vm426, %v424, 0
        %430 = vmatprep.subr.mxu0 0.0
        %431 = vmatpush1.msra.mxu0 %v422
        %432 = vmatprep.subr.mxu0 0.0
        %433 = vmatpush1.msra.mxu0 %v423
        %434 = vmatprep.subr.mxu0 0.0
        %435 = vmatpush1.msra.mxu0 0.0
        %436 = vmatprep.subr.mxu0 0.0
        %437 = vmatpush1.msra.mxu0 0.0
        %438 = vmatprep.subr.mxu0 0.0
        %439 = vmatpush1.msra.mxu0 0.0
        %440 = vmatprep.subr.mxu0 0.0
        %441 = vmatpush1.msra.mxu0 0.0
        %442 = vmatprep.subr.mxu0 0.0
        %443 = vmatpush1.msra.mxu0 0.0
        %444 = vmatprep.subr.mxu0 0.0
        %445 = vmatpush1.msra.mxu0 0.0
        %446 = vmatprep.subr.mxu0 0.0
        %447 = vmatpush1.msra.mxu0 0.0
        %448 = vmatprep.subr.mxu0 0.0
        %449 = vmatpush1.msra.mxu0 0.0
        %450 = vmatprep.subr.mxu0 0.0
        %451 = vmatpush1.msra.mxu0 0.0
        %452 = vmatprep.subr.mxu0 0.0
        %453 = vmatpush1.msra.mxu0 0.0
        %454 = vmatprep.subr.mxu0 0.0
        %455 = vmatpush1.msra.mxu0 0.0
        %456 = vmatprep.subr.mxu0 0.0
        %457 = vmatpush1.msra.mxu0 0.0
        %458 = vmatprep.subr.mxu0 0.0
        %459 = vmatpush1.msra.mxu0 0.0
        %460 = vmatprep.subr.mxu0 0.0
        %461 = vmatpush1.msra.mxu0 0.0
        %462 = vmatprep.subr.mxu0 0.0
        %463 = vmatpush1.msra.mxu0 0.0
        %464 = vmatprep.subr.mxu0 0.0
        %465 = vmatpush1.msra.mxu0 0.0
        %466 = vmatprep.subr.mxu0 0.0
        %467 = vmatpush1.msra.mxu0 0.0
        %468 = vmatprep.subr.mxu0 0.0
        %469 = vmatpush1.msra.mxu0 0.0
        %470 = vmatprep.subr.mxu0 0.0
        %471 = vmatpush1.msra.mxu0 0.0
        %472 = vmatprep.subr.mxu0 0.0
        %473 = vmatpush1.msra.mxu0 0.0
        %474 = vmatprep.subr.mxu0 0.0
        %475 = vmatpush1.msra.mxu0 0.0
        %476 = vmatprep.subr.mxu0 0.0
        %477 = vmatpush1.msra.mxu0 0.0
        %478 = vmatprep.subr.mxu0 0.0
        %479 = vmatpush1.msra.mxu0 0.0
        %480 = vmatprep.subr.mxu0 0.0
        %481 = vmatpush1.msra.mxu0 0.0
        %482 = vmatprep.subr.mxu0 0.0
        %483 = vmatpush1.msra.mxu0 0.0
        %484 = vmatprep.subr.mxu0 0.0
        %485 = vmatpush1.msra.mxu0 0.0
        %486 = vmatprep.subr.mxu0 0.0
        %487 = vmatpush1.msra.mxu0 0.0
        %488 = vmatprep.subr.mxu0 0.0
        %489 = vmatpush1.msra.mxu0 0.0
        %490 = vmatprep.subr.mxu0 0.0
        %491 = vmatpush1.msra.mxu0 0.0
        %492 = vmatprep.subr.mxu0 0.0
        %493 = vmatpush1.msra.mxu0 0.0
        %494 = vmatprep.mubr.f32.mxu0 0.0
        %495 = vmatmul.mubr.f32.gmra.mrb[0].mxu0 %v428
        %v496 = vpop.f32.mrb[0].mxu0
        %v497 = vadd.f32 %v425, %v496
        %v498 = vpop.f32.mrb[0].mxu0
        %499 = vdwg.mxu0
        %v500 = vmax.f32 %v497, 0.0
        %v501 = vld [vmem:[%s6] sm:$0xff]
        %v502 = vld [vmem:[%s6 + $0x8] sm:$0xff]
        %v503 = vld [vmem:[%s7] sm:$0xff]
        %v504 = vld [vmem:[%s7 + $0x8] sm:$0xff]
        %vm505 = vcmask 7168
        %v507 = vsel %vm505, %v501, 0
        %v510 = vsel %vm505, %v502, 0
        %vm512 = vcmask 1040384
        %v514 = vsel %vm512, %v500, 0
        %516 = vmatprep.subr.mxu0 0.0
        %517 = vmatpush1.msra.mxu0 %v514
        %518 = vmatprep.subr.mxu0 0.0
        %519 = vmatpush1.msra.mxu0 0.0
        %520 = vmatprep.subr.mxu0 0.0
        %521 = vmatpush1.msra.mxu0 0.0
        %522 = vmatprep.subr.mxu0 0.0
        %523 = vmatpush1.msra.mxu0 0.0
        %524 = vmatprep.subr.mxu0 0.0
        %525 = vmatpush1.msra.mxu0 0.0
        %526 = vmatprep.subr.mxu0 0.0
        %527 = vmatpush1.msra.mxu0 0.0
        %528 = vmatprep.subr.mxu0 0.0
        %529 = vmatpush1.msra.mxu0 0.0
        %530 = vmatprep.subr.mxu0 0.0
        %531 = vmatpush1.msra.mxu0 0.0
        %532 = vmatprep.subr.mxu0 0.0
        %533 = vmatpush1.msra.mxu0 0.0
        %534 = vmatprep.subr.mxu0 0.0
        %535 = vmatpush1.msra.mxu0 0.0
        %536 = vmatprep.subr.mxu0 0.0
        %537 = vmatpush1.msra.mxu0 0.0
        %538 = vmatprep.subr.mxu0 0.0
        %539 = vmatpush1.msra.mxu0 0.0
        %540 = vmatprep.subr.mxu0 0.0
        %541 = vmatpush1.msra.mxu0 0.0
        %542 = vmatprep.subr.mxu0 0.0
        %543 = vmatpush1.msra.mxu0 0.0
        %544 = vmatprep.subr.mxu0 0.0
        %545 = vmatpush1.msra.mxu0 0.0
        %546 = vmatprep.subr.mxu0 0.0
        %547 = vmatpush1.msra.mxu0 0.0
        %548 = vmatprep.subr.mxu0 0.0
        %549 = vmatpush1.msra.mxu0 0.0
        %550 = vmatprep.subr.mxu0 0.0
        %551 = vmatpush1.msra.mxu0 0.0
        %552 = vmatprep.subr.mxu0 0.0
        %553 = vmatpush1.msra.mxu0 0.0
        %554 = vmatprep.subr.mxu0 0.0
        %555 = vmatpush1.msra.mxu0 0.0
        %556 = vmatprep.subr.mxu0 0.0
        %557 = vmatpush1.msra.mxu0 0.0
        %558 = vmatprep.subr.mxu0 0.0
        %559 = vmatpush1.msra.mxu0 0.0
        %560 = vmatprep.subr.mxu0 0.0
        %561 = vmatpush1.msra.mxu0 0.0
        %562 = vmatprep.subr.mxu0 0.0
        %563 = vmatpush1.msra.mxu0 0.0
        %564 = vmatprep.subr.mxu0 0.0
        %565 = vmatpush1.msra.mxu0 0.0
        %566 = vmatprep.subr.mxu0 0.0
        %567 = vmatpush1.msra.mxu0 0.0
        %568 = vmatprep.subr.mxu0 0.0
        %569 = vmatpush1.msra.mxu0 0.0
        %570 = vmatprep.subr.mxu0 0.0
        %571 = vmatpush1.msra.mxu0 0.0
        %572 = vmatprep.subr.mxu0 0.0
        %573 = vmatpush1.msra.mxu0 0.0
        %574 = vmatprep.subr.mxu0 0.0
        %575 = vmatpush1.msra.mxu0 0.0
        %576 = vmatprep.subr.mxu0 0.0
        %577 = vmatpush1.msra.mxu0 0.0
        %578 = vmatprep.subr.mxu0 0.0
        %579 = vmatpush1.msra.mxu0 0.0
        %580 = vmatprep.mubr.f32.mxu0 0.0
        %581 = vmatmul.mubr.f32.gmra.mrb[0].mxu0 %v507
        %v582 = vpop.f32.mrb[0].mxu0
        %v583 = vadd.f32 %v503, %v582
        %v584 = vpop.f32.mrb[0].mxu0
        %585 = vmatprep.mubr.f32.mxu0 0.0
        %586 = vmatmul.mubr.f32.gmra.mrb[0].mxu0 %v510
        %v587 = vpop.f32.mrb[0].mxu0
        %v588 = vadd.f32 %v504, %v587
        %v589 = vpop.f32.mrb[0].mxu0
        %590 = vdwg.mxu0
        %v591 = vxor.u32 %v583, 2147483648
        %v592 = vxor.u32 %v588, 2147483648
        %v593 = vmul.f32 %v591, 1.442695
        %v594 = vpow.pop %v593
        %v595 = vmul.f32 %v592, 1.442695
        %v596 = vpow.pop %v595
        %v597 = vadd.f32 %v594, 1.0
        %v598 = vadd.f32 %v596, 1.0
        %v599 = vrcp.pop %v597
        %v600 = vmul.f32 1.0, %v599
        %v601 = vrcp.pop %v598
        %v602 = vmul.f32 1.0, %v601
        %603 = vrot.lane.b32.xlu0 %v411, 17
        %v604 = vpop.permute.xlu0 %603
        %605 = vrot.lane.b32.xlu0 %v413, 17
        %v606 = vpop.permute.xlu0 %605
        %607 = vrot.lane.b32.xlu0 %v412, 17
        %v608 = vpop.permute.xlu0 %607
        %609 = vrot.lane.b32.xlu0 %v414, 17
        %v610 = vpop.permute.xlu0 %609
        %v611 = vlaneseq
        %v612 = vand.u32 %v611, 127
        %vm613 = vcmp.lt.s32.totalorder %v612, 17
        %v614 = vsel %vm613, %v604, %v608
        %v615 = vsel %vm613, %v606, %v610
        %v616 = vsel %vm613, %v608, %v604
        %v617 = vsel %vm613, %v610, %v606
        %v618 = vld [vmem:[#allocation8] sm:$0x3]
        %v620 = vlaneseq
        %v621 = vshrl.u32 %v620, 7
        %v622 = vsub.s32 0, %v621
        %v623 = vrot.slane %v618, %v622
        %v624 = vlaneseq
        %v625 = vshrl.u32 %v624, 7
        %v626 = vsub.s32 1, %v625
        %v627 = vrot.slane %v618, %v626
        %v630 = vmul.f32 %v616, %v623
        %v631 = vmul.f32 %v614, %v627
        %v632 = vmul.f32 %v617, %v623
        %v633 = vmul.f32 %v615, %v627
        %v634 = vld [vmem:[%s2] sm:$0xf]
        %v635 = vld [vmem:[%s2 + $0x4] sm:$0xf]
        %v636 = vpack.c.bf16 %v632, %v630
        %v637 = vpack.c.bf16 %v633, %v631
        %638 = vrot.lane.b32.xlu0 %v411, 16
        %v639 = vpop.permute.xlu0 %638
        %640 = vrot.lane.b32.xlu0 %v413, 16
        %v641 = vpop.permute.xlu0 %640
        %642 = vrot.lane.b32.xlu0 %v412, 16
        %v643 = vpop.permute.xlu0 %642
        %644 = vrot.lane.b32.xlu0 %v414, 16
        %v645 = vpop.permute.xlu0 %644
        %vm646 = vcmp.lt.s32.totalorder %v612, 16
        %v647 = vsel %vm646, %v639, %v643
        %v648 = vsel %vm646, %v641, %v645
        %v649 = vsel %vm646, %v643, %v639
        %v650 = vsel %vm646, %v645, %v641
        %s651 = scalar_lea.vmem [#allocation8], 2
        %v652 = vld [vmem:[%s651] sm:$0x3]
        %v654 = vlaneseq
        %v655 = vshrl.u32 %v654, 7
        %v656 = vsub.s32 0, %v655
        %v657 = vrot.slane %v652, %v656
        %v658 = vlaneseq
        %v659 = vshrl.u32 %v658, 7
        %v660 = vsub.s32 1, %v659
        %v661 = vrot.slane %v652, %v660
        %v664 = vmul.f32 %v649, %v657
        %v665 = vmul.f32 %v647, %v661
        %v666 = vmul.f32 %v650, %v657
        %v667 = vmul.f32 %v648, %v661
        %s668 = scalar_lea.vmem %s2, 8
        %v669 = vld [vmem:[%s668] sm:$0xf]
        %v670 = vld [vmem:[%s668 + $0x4] sm:$0xf]
        %v671 = vpack.c.bf16 %v666, %v664
        %v672 = vpack.c.bf16 %v667, %v665
        %v675 = vunpack.c.l.b16 %v669
        %v676 = vunpack.c.l.b16 %v670
        %v677 = vpack.c.b16 %v676, %v675
        %v679 = vsel %vm426, %v677, 0
        %681 = vmatprep.subr.bf16.mxu0 %v672
        %682 = vmatpush1.bf16.msra.mxu0 %v671
        %683 = vmatprep.subr.bf16.mxu0 0
        %684 = vmatpush1.bf16.msra.mxu0 0
        %685 = vmatprep.subr.bf16.mxu0 0
        %686 = vmatpush1.bf16.msra.mxu0 0
        %687 = vmatprep.subr.bf16.mxu0 0
        %688 = vmatpush1.bf16.msra.mxu0 0
        %689 = vmatprep.subr.bf16.mxu0 0
        %690 = vmatpush1.bf16.msra.mxu0 0
        %691 = vmatprep.subr.bf16.mxu0 0
        %692 = vmatpush1.bf16.msra.mxu0 0
        %693 = vmatprep.subr.bf16.mxu0 0
        %694 = vmatpush1.bf16.msra.mxu0 0
        %695 = vmatprep.subr.bf16.mxu0 0
        %696 = vmatpush1.bf16.msra.mxu0 0
        %697 = vmatprep.subr.bf16.mxu0 0
        %698 = vmatpush1.bf16.msra.mxu0 0
        %699 = vmatprep.subr.bf16.mxu0 0
        %700 = vmatpush1.bf16.msra.mxu0 0
        %701 = vmatprep.subr.bf16.mxu0 0
        %702 = vmatpush1.bf16.msra.mxu0 0
        %703 = vmatprep.subr.bf16.mxu0 0
        %704 = vmatpush1.bf16.msra.mxu0 0
        %705 = vmatprep.subr.bf16.mxu0 0
        %706 = vmatpush1.bf16.msra.mxu0 0
        %707 = vmatprep.subr.bf16.mxu0 0
        %708 = vmatpush1.bf16.msra.mxu0 0
        %709 = vmatprep.subr.bf16.mxu0 0
        %710 = vmatpush1.bf16.msra.mxu0 0
        %711 = vmatprep.subr.bf16.mxu0 0
        %712 = vmatpush1.bf16.msra.mxu0 0
        %713 = vmatprep.mubr.bf16.mxu0 0
        %714 = vmatmul.mubr.bf16.gmra.mrb[0].mxu0 %v679
        %v715 = vpop.f32.mrb[0].mxu0
        %v716 = vadd.f32 0.0, %v715
        %v717 = vpop.f32.mrb[0].mxu0
        %v718 = vadd.f32 0.0, %v717
        %v719 = vpop.f32.mrb[0].mxu0
        %v720 = vadd.f32 0.0, %v719
        %v721 = vpop.f32.mrb[0].mxu0
        %v722 = vadd.f32 0.0, %v721
        %723 = vdwg.mxu0
        %v726 = vunpack.c.l.b16 %v634
        %v727 = vunpack.c.l.b16 %v635
        %v728 = vpack.c.b16 %v727, %v726
        %v730 = vsel %vm426, %v728, 0
        %732 = vmatprep.subr.bf16.mxu0 %v637
        %733 = vmatpush1.bf16.msra.mxu0 %v636
        %734 = vmatprep.subr.bf16.mxu0 0
        %735 = vmatpush1.bf16.msra.mxu0 0
        %736 = vmatprep.subr.bf16.mxu0 0
        %737 = vmatpush1.bf16.msra.mxu0 0
        %738 = vmatprep.subr.bf16.mxu0 0
        %739 = vmatpush1.bf16.msra.mxu0 0
        %740 = vmatprep.subr.bf16.mxu0 0
        %741 = vmatpush1.bf16.msra.mxu0 0
        %742 = vmatprep.subr.bf16.mxu0 0
        %743 = vmatpush1.bf16.msra.mxu0 0
        %744 = vmatprep.subr.bf16.mxu0 0
        %745 = vmatpush1.bf16.msra.mxu0 0
        %746 = vmatprep.subr.bf16.mxu0 0
        %747 = vmatpush1.bf16.msra.mxu0 0
        %748 = vmatprep.subr.bf16.mxu0 0
        %749 = vmatpush1.bf16.msra.mxu0 0
        %750 = vmatprep.subr.bf16.mxu0 0
        %751 = vmatpush1.bf16.msra.mxu0 0
        %752 = vmatprep.subr.bf16.mxu0 0
        %753 = vmatpush1.bf16.msra.mxu0 0
        %754 = vmatprep.subr.bf16.mxu0 0
        %755 = vmatpush1.bf16.msra.mxu0 0
        %756 = vmatprep.subr.bf16.mxu0 0
        %757 = vmatpush1.bf16.msra.mxu0 0
        %758 = vmatprep.subr.bf16.mxu0 0
        %759 = vmatpush1.bf16.msra.mxu0 0
        %760 = vmatprep.subr.bf16.mxu0 0
        %761 = vmatpush1.bf16.msra.mxu0 0
        %762 = vmatprep.subr.bf16.mxu0 0
        %763 = vmatpush1.bf16.msra.mxu0 0
        %764 = vmatprep.mubr.bf16.mxu0 0
        %765 = vmatmul.mubr.bf16.gmra.mrb[0].mxu0 %v730
        %v766 = vpop.f32.mrb[0].mxu0
        %v767 = vadd.f32 %v716, %v766
        %v768 = vpop.f32.mrb[0].mxu0
        %v769 = vadd.f32 %v718, %v768
        %v770 = vpop.f32.mrb[0].mxu0
        %v771 = vadd.f32 %v720, %v770
        %v772 = vpop.f32.mrb[0].mxu0
        %v773 = vadd.f32 %v722, %v772
        %774 = vdwg.mxu0
        %775 = vrot.lane.b32.xlu0 %v411, 15
        %v776 = vpop.permute.xlu0 %775
        %777 = vrot.lane.b32.xlu0 %v413, 15
        %v778 = vpop.permute.xlu0 %777
        %779 = vrot.lane.b32.xlu0 %v412, 15
        %v780 = vpop.permute.xlu0 %779
        %781 = vrot.lane.b32.xlu0 %v414, 15
        %v782 = vpop.permute.xlu0 %781
        %vm783 = vcmp.lt.s32.totalorder %v612, 15
        %v784 = vsel %vm783, %v776, %v780
        %v785 = vsel %vm783, %v778, %v782
        %v786 = vsel %vm783, %v780, %v776
        %v787 = vsel %vm783, %v782, %v778
        %s788 = scalar_lea.vmem [#allocation8], 4
        %v789 = vld [vmem:[%s788] sm:$0x3]
        %v791 = vlaneseq
        %v792 = vshrl.u32 %v791, 7
        %v793 = vsub.s32 0, %v792
        %v794 = vrot.slane %v789, %v793
        %v795 = vlaneseq
        %v796 = vshrl.u32 %v795, 7
        %v797 = vsub.s32 1, %v796
        %v798 = vrot.slane %v789, %v797
        %v801 = vmul.f32 %v786, %v794
        %v802 = vmul.f32 %v784, %v798
        %v803 = vmul.f32 %v787, %v794
        %v804 = vmul.f32 %v785, %v798
        %s805 = scalar_lea.vmem %s2, 16
        %v806 = vld [vmem:[%s805] sm:$0xf]
        %v807 = vld [vmem:[%s805 + $0x4] sm:$0xf]
        %v808 = vpack.c.bf16 %v803, %v801
        %v809 = vpack.c.bf16 %v804, %v802
        %v812 = vunpack.c.l.b16 %v806
        %v813 = vunpack.c.l.b16 %v807
        %v814 = vpack.c.b16 %v813, %v812
        %v816 = vsel %vm426, %v814, 0
        %818 = vmatprep.subr.bf16.mxu0 %v809
        %819 = vmatpush1.bf16.msra.mxu0 %v808
        %820 = vmatprep.subr.bf16.mxu0 0
        %821 = vmatpush1.bf16.msra.mxu0 0
        %822 = vmatprep.subr.bf16.mxu0 0
        %823 = vmatpush1.bf16.msra.mxu0 0
        %824 = vmatprep.subr.bf16.mxu0 0
        %825 = vmatpush1.bf16.msra.mxu0 0
        %826 = vmatprep.subr.bf16.mxu0 0
        %827 = vmatpush1.bf16.msra.mxu0 0
        %828 = vmatprep.subr.bf16.mxu0 0
        %829 = vmatpush1.bf16.msra.mxu0 0
        %830 = vmatprep.subr.bf16.mxu0 0
        %831 = vmatpush1.bf16.msra.mxu0 0
        %832 = vmatprep.subr.bf16.mxu0 0
        %833 = vmatpush1.bf16.msra.mxu0 0
        %834 = vmatprep.subr.bf16.mxu0 0
        %835 = vmatpush1.bf16.msra.mxu0 0
        %836 = vmatprep.subr.bf16.mxu0 0
        %837 = vmatpush1.bf16.msra.mxu0 0
        %838 = vmatprep.subr.bf16.mxu0 0
        %839 = vmatpush1.bf16.msra.mxu0 0
        %840 = vmatprep.subr.bf16.mxu0 0
        %841 = vmatpush1.bf16.msra.mxu0 0
        %842 = vmatprep.subr.bf16.mxu0 0
        %843 = vmatpush1.bf16.msra.mxu0 0
        %844 = vmatprep.subr.bf16.mxu0 0
        %845 = vmatpush1.bf16.msra.mxu0 0
        %846 = vmatprep.subr.bf16.mxu0 0
        %847 = vmatpush1.bf16.msra.mxu0 0
        %848 = vmatprep.subr.bf16.mxu0 0
        %849 = vmatpush1.bf16.msra.mxu0 0
        %850 = vmatprep.mubr.bf16.mxu0 0
        %851 = vmatmul.mubr.bf16.gmra.mrb[0].mxu0 %v816
        %v852 = vpop.f32.mrb[0].mxu0
        %v853 = vadd.f32 0.0, %v852
        %v854 = vpop.f32.mrb[0].mxu0
        %v855 = vadd.f32 0.0, %v854
        %v856 = vpop.f32.mrb[0].mxu0
        %v857 = vadd.f32 0.0, %v856
        %v858 = vpop.f32.mrb[0].mxu0
        %v859 = vadd.f32 0.0, %v858
        %860 = vdwg.mxu0
        %v861 = vadd.f32 %v767, %v853
        %v862 = vadd.f32 %v769, %v855
        %v863 = vadd.f32 %v771, %v857
        %v864 = vadd.f32 %v773, %v859
        %865 = vrot.lane.b32.xlu0 %v411, 1
        %v866 = vpop.permute.xlu0 %865
        %867 = vrot.lane.b32.xlu0 %v413, 1
        %v868 = vpop.permute.xlu0 %867
        %869 = vrot.lane.b32.xlu0 %v412, 1
        %v870 = vpop.permute.xlu0 %869
        %871 = vrot.lane.b32.xlu0 %v414, 1
        %v872 = vpop.permute.xlu0 %871
        %vm873 = vcmp.lt.s32.totalorder %v612, 1
        %v874 = vsel %vm873, %v866, %v870
        %v875 = vsel %vm873, %v868, %v872
        %v876 = vsel %vm873, %v870, %v866
        %v877 = vsel %vm873, %v872, %v868
        %s878 = scalar_lea.vmem [#allocation8], 6
        %v879 = vld [vmem:[%s878] sm:$0x3]
        %v881 = vlaneseq
        %v882 = vshrl.u32 %v881, 7
        %v883 = vsub.s32 0, %v882
        %v884 = vrot.slane %v879, %v883
        %v885 = vlaneseq
        %v886 = vshrl.u32 %v885, 7
        %v887 = vsub.s32 1, %v886
        %v888 = vrot.slane %v879, %v887
        %v891 = vmul.f32 %v876, %v884
        %v892 = vmul.f32 %v874, %v888
        %v893 = vmul.f32 %v877, %v884
        %v894 = vmul.f32 %v875, %v888
        %s895 = scalar_lea.vmem %s2, 24
        %v896 = vld [vmem:[%s895] sm:$0xf]
        %v897 = vld [vmem:[%s895 + $0x4] sm:$0xf]
        %v898 = vpack.c.bf16 %v893, %v891
        %v899 = vpack.c.bf16 %v894, %v892
        %v902 = vunpack.c.l.b16 %v896
        %v903 = vunpack.c.l.b16 %v897
        %v904 = vpack.c.b16 %v903, %v902
        %v906 = vsel %vm426, %v904, 0
        %908 = vmatprep.subr.bf16.mxu0 %v899
        %909 = vmatpush1.bf16.msra.mxu0 %v898
        %910 = vmatprep.subr.bf16.mxu0 0
        %911 = vmatpush1.bf16.msra.mxu0 0
        %912 = vmatprep.subr.bf16.mxu0 0
        %913 = vmatpush1.bf16.msra.mxu0 0
        %914 = vmatprep.subr.bf16.mxu0 0
        %915 = vmatpush1.bf16.msra.mxu0 0
        %916 = vmatprep.subr.bf16.mxu0 0
        %917 = vmatpush1.bf16.msra.mxu0 0
        %918 = vmatprep.subr.bf16.mxu0 0
        %919 = vmatpush1.bf16.msra.mxu0 0
        %920 = vmatprep.subr.bf16.mxu0 0
        %921 = vmatpush1.bf16.msra.mxu0 0
        %922 = vmatprep.subr.bf16.mxu0 0
        %923 = vmatpush1.bf16.msra.mxu0 0
        %924 = vmatprep.subr.bf16.mxu0 0
        %925 = vmatpush1.bf16.msra.mxu0 0
        %926 = vmatprep.subr.bf16.mxu0 0
        %927 = vmatpush1.bf16.msra.mxu0 0
        %928 = vmatprep.subr.bf16.mxu0 0
        %929 = vmatpush1.bf16.msra.mxu0 0
        %930 = vmatprep.subr.bf16.mxu0 0
        %931 = vmatpush1.bf16.msra.mxu0 0
        %932 = vmatprep.subr.bf16.mxu0 0
        %933 = vmatpush1.bf16.msra.mxu0 0
        %934 = vmatprep.subr.bf16.mxu0 0
        %935 = vmatpush1.bf16.msra.mxu0 0
        %936 = vmatprep.subr.bf16.mxu0 0
        %937 = vmatpush1.bf16.msra.mxu0 0
        %938 = vmatprep.subr.bf16.mxu0 0
        %939 = vmatpush1.bf16.msra.mxu0 0
        %940 = vmatprep.mubr.bf16.mxu0 0
        %941 = vmatmul.mubr.bf16.gmra.mrb[0].mxu0 %v906
        %v942 = vpop.f32.mrb[0].mxu0
        %v943 = vadd.f32 0.0, %v942
        %v944 = vpop.f32.mrb[0].mxu0
        %v945 = vadd.f32 0.0, %v944
        %v946 = vpop.f32.mrb[0].mxu0
        %v947 = vadd.f32 0.0, %v946
        %v948 = vpop.f32.mrb[0].mxu0
        %v949 = vadd.f32 0.0, %v948
        %950 = vdwg.mxu0
        %v951 = vadd.f32 %v861, %v943
        %v952 = vadd.f32 %v862, %v945
        %v953 = vadd.f32 %v863, %v947
        %v954 = vadd.f32 %v864, %v949
        %s955 = scalar_lea.vmem %s2, 32
        %v956 = vld [vmem:[%s955] sm:$0xf]
        %v957 = vld [vmem:[%s955 + $0x4] sm:$0xf]
        %v958 = vpack.c.bf16 %v413, %v411
        %v959 = vpack.c.bf16 %v414, %v412
        %v962 = vunpack.c.l.b16 %v956
        %v963 = vunpack.c.l.b16 %v957
        %v964 = vpack.c.b16 %v963, %v962
        %v966 = vsel %vm426, %v964, 0
        %968 = vmatprep.subr.bf16.mxu0 %v959
        %969 = vmatpush1.bf16.msra.mxu0 %v958
        %970 = vmatprep.subr.bf16.mxu0 0
        %971 = vmatpush1.bf16.msra.mxu0 0
        %972 = vmatprep.subr.bf16.mxu0 0
        %973 = vmatpush1.bf16.msra.mxu0 0
        %974 = vmatprep.subr.bf16.mxu0 0
        %975 = vmatpush1.bf16.msra.mxu0 0
        %976 = vmatprep.subr.bf16.mxu0 0
        %977 = vmatpush1.bf16.msra.mxu0 0
        %978 = vmatprep.subr.bf16.mxu0 0
        %979 = vmatpush1.bf16.msra.mxu0 0
        %980 = vmatprep.subr.bf16.mxu0 0
        %981 = vmatpush1.bf16.msra.mxu0 0
        %982 = vmatprep.subr.bf16.mxu0 0
        %983 = vmatpush1.bf16.msra.mxu0 0
        %984 = vmatprep.subr.bf16.mxu0 0
        %985 = vmatpush1.bf16.msra.mxu0 0
        %986 = vmatprep.subr.bf16.mxu0 0
        %987 = vmatpush1.bf16.msra.mxu0 0
        %988 = vmatprep.subr.bf16.mxu0 0
        %989 = vmatpush1.bf16.msra.mxu0 0
        %990 = vmatprep.subr.bf16.mxu0 0
        %991 = vmatpush1.bf16.msra.mxu0 0
        %992 = vmatprep.subr.bf16.mxu0 0
        %993 = vmatpush1.bf16.msra.mxu0 0
        %994 = vmatprep.subr.bf16.mxu0 0
        %995 = vmatpush1.bf16.msra.mxu0 0
        %996 = vmatprep.subr.bf16.mxu0 0
        %997 = vmatpush1.bf16.msra.mxu0 0
        %998 = vmatprep.subr.bf16.mxu0 0
        %999 = vmatpush1.bf16.msra.mxu0 0
        %1000 = vmatprep.mubr.bf16.mxu0 0
        %1001 = vmatmul.mubr.bf16.gmra.mrb[0].mxu0 %v966
        %v1002 = vpop.f32.mrb[0].mxu0
        %v1003 = vadd.f32 0.0, %v1002
        %v1004 = vpop.f32.mrb[0].mxu0
        %v1005 = vadd.f32 0.0, %v1004
        %v1006 = vpop.f32.mrb[0].mxu0
        %v1007 = vadd.f32 0.0, %v1006
        %v1008 = vpop.f32.mrb[0].mxu0
        %v1009 = vadd.f32 0.0, %v1008
        %1010 = vdwg.mxu0
        %v1011 = vadd.f32 %v951, %v1003
        %v1012 = vadd.f32 %v952, %v1005
        %v1013 = vadd.f32 %v953, %v1007
        %v1014 = vadd.f32 %v954, %v1009
        %1015 = vrot.lane.b32.xlu0 %v411, 127
        %v1016 = vpop.permute.xlu0 %1015
        %1017 = vrot.lane.b32.xlu0 %v413, 127
        %v1018 = vpop.permute.xlu0 %1017
        %1019 = vrot.lane.b32.xlu0 %v412, 127
        %v1020 = vpop.permute.xlu0 %1019
        %1021 = vrot.lane.b32.xlu0 %v414, 127
        %v1022 = vpop.permute.xlu0 %1021
        %vm1023 = vcmp.lt.s32.totalorder %v612, 127
        %v1024 = vsel %vm1023, %v1016, %v1020
        %v1025 = vsel %vm1023, %v1018, %v1022
        %v1026 = vsel %vm1023, %v1020, %v1016
        %v1027 = vsel %vm1023, %v1022, %v1018
        %s1028 = scalar_lea.vmem [#allocation8], 10
        %v1029 = vld [vmem:[%s1028] sm:$0x3]
        %v1031 = vlaneseq
        %v1032 = vshrl.u32 %v1031, 7
        %v1033 = vsub.s32 0, %v1032
        %v1034 = vrot.slane %v1029, %v1033
        %v1035 = vlaneseq
        %v1036 = vshrl.u32 %v1035, 7
        %v1037 = vsub.s32 1, %v1036
        %v1038 = vrot.slane %v1029, %v1037
        %v1041 = vmul.f32 %v1024, %v1034
        %v1042 = vmul.f32 %v1026, %v1038
        %v1043 = vmul.f32 %v1025, %v1034
        %v1044 = vmul.f32 %v1027, %v1038
        %s1045 = scalar_lea.vmem %s2, 40
        %v1046 = vld [vmem:[%s1045] sm:$0xf]
        %v1047 = vld [vmem:[%s1045 + $0x4] sm:$0xf]
        %v1048 = vpack.c.bf16 %v1043, %v1041
        %v1049 = vpack.c.bf16 %v1044, %v1042
        %v1052 = vunpack.c.l.b16 %v1046
        %v1053 = vunpack.c.l.b16 %v1047
        %v1054 = vpack.c.b16 %v1053, %v1052
        %v1056 = vsel %vm426, %v1054, 0
        %1058 = vmatprep.subr.bf16.mxu0 %v1049
        %1059 = vmatpush1.bf16.msra.mxu0 %v1048
        %1060 = vmatprep.subr.bf16.mxu0 0
        %1061 = vmatpush1.bf16.msra.mxu0 0
        %1062 = vmatprep.subr.bf16.mxu0 0
        %1063 = vmatpush1.bf16.msra.mxu0 0
        %1064 = vmatprep.subr.bf16.mxu0 0
        %1065 = vmatpush1.bf16.msra.mxu0 0
        %1066 = vmatprep.subr.bf16.mxu0 0
        %1067 = vmatpush1.bf16.msra.mxu0 0
        %1068 = vmatprep.subr.bf16.mxu0 0
        %1069 = vmatpush1.bf16.msra.mxu0 0
        %1070 = vmatprep.subr.bf16.mxu0 0
        %1071 = vmatpush1.bf16.msra.mxu0 0
        %1072 = vmatprep.subr.bf16.mxu0 0
        %1073 = vmatpush1.bf16.msra.mxu0 0
        %1074 = vmatprep.subr.bf16.mxu0 0
        %1075 = vmatpush1.bf16.msra.mxu0 0
        %1076 = vmatprep.subr.bf16.mxu0 0
        %1077 = vmatpush1.bf16.msra.mxu0 0
        %1078 = vmatprep.subr.bf16.mxu0 0
        %1079 = vmatpush1.bf16.msra.mxu0 0
        %1080 = vmatprep.subr.bf16.mxu0 0
        %1081 = vmatpush1.bf16.msra.mxu0 0
        %1082 = vmatprep.subr.bf16.mxu0 0
        %1083 = vmatpush1.bf16.msra.mxu0 0
        %1084 = vmatprep.subr.bf16.mxu0 0
        %1085 = vmatpush1.bf16.msra.mxu0 0
        %1086 = vmatprep.subr.bf16.mxu0 0
        %1087 = vmatpush1.bf16.msra.mxu0 0
        %1088 = vmatprep.subr.bf16.mxu0 0
        %1089 = vmatpush1.bf16.msra.mxu0 0
        %1090 = vmatprep.mubr.bf16.mxu0 0
        %1091 = vmatmul.mubr.bf16.gmra.mrb[0].mxu0 %v1056
        %v1092 = vpop.f32.mrb[0].mxu0
        %v1093 = vadd.f32 0.0, %v1092
        %v1094 = vpop.f32.mrb[0].mxu0
        %v1095 = vadd.f32 0.0, %v1094
        %v1096 = vpop.f32.mrb[0].mxu0
        %v1097 = vadd.f32 0.0, %v1096
        %v1098 = vpop.f32.mrb[0].mxu0
        %v1099 = vadd.f32 0.0, %v1098
        %1100 = vdwg.mxu0
        %v1101 = vadd.f32 %v1011, %v1093
        %v1102 = vadd.f32 %v1012, %v1095
        %v1103 = vadd.f32 %v1013, %v1097
        %v1104 = vadd.f32 %v1014, %v1099
        %1105 = vrot.lane.b32.xlu0 %v411, 113
        %v1106 = vpop.permute.xlu0 %1105
        %1107 = vrot.lane.b32.xlu0 %v413, 113
        %v1108 = vpop.permute.xlu0 %1107
        %1109 = vrot.lane.b32.xlu0 %v412, 113
        %v1110 = vpop.permute.xlu0 %1109
        %1111 = vrot.lane.b32.xlu0 %v414, 113
        %v1112 = vpop.permute.xlu0 %1111
        %vm1113 = vcmp.lt.s32.totalorder %v612, 113
        %v1114 = vsel %vm1113, %v1106, %v1110
        %v1115 = vsel %vm1113, %v1108, %v1112
        %v1116 = vsel %vm1113, %v1110, %v1106
        %v1117 = vsel %vm1113, %v1112, %v1108
        %s1118 = scalar_lea.vmem [#allocation8], 12
        %v1119 = vld [vmem:[%s1118] sm:$0x3]
        %v1121 = vlaneseq
        %v1122 = vshrl.u32 %v1121, 7
        %v1123 = vsub.s32 0, %v1122
        %v1124 = vrot.slane %v1119, %v1123
        %v1125 = vlaneseq
        %v1126 = vshrl.u32 %v1125, 7
        %v1127 = vsub.s32 1, %v1126
        %v1128 = vrot.slane %v1119, %v1127
        %v1131 = vmul.f32 %v1114, %v1124
        %v1132 = vmul.f32 %v1116, %v1128
        %v1133 = vmul.f32 %v1115, %v1124
        %v1134 = vmul.f32 %v1117, %v1128
        %s1135 = scalar_lea.vmem %s2, 48
        %v1136 = vld [vmem:[%s1135] sm:$0xf]
        %v1137 = vld [vmem:[%s1135 + $0x4] sm:$0xf]
        %v1138 = vpack.c.bf16 %v1133, %v1131
        %v1139 = vpack.c.bf16 %v1134, %v1132
        %v1142 = vunpack.c.l.b16 %v1136
        %v1143 = vunpack.c.l.b16 %v1137
        %v1144 = vpack.c.b16 %v1143, %v1142
        %v1146 = vsel %vm426, %v1144, 0
        %1148 = vmatprep.subr.bf16.mxu0 %v1139
        %1149 = vmatpush1.bf16.msra.mxu0 %v1138
        %1150 = vmatprep.subr.bf16.mxu0 0
        %1151 = vmatpush1.bf16.msra.mxu0 0
        %1152 = vmatprep.subr.bf16.mxu0 0
        %1153 = vmatpush1.bf16.msra.mxu0 0
        %1154 = vmatprep.subr.bf16.mxu0 0
        %1155 = vmatpush1.bf16.msra.mxu0 0
        %1156 = vmatprep.subr.bf16.mxu0 0
        %1157 = vmatpush1.bf16.msra.mxu0 0
        %1158 = vmatprep.subr.bf16.mxu0 0
        %1159 = vmatpush1.bf16.msra.mxu0 0
        %1160 = vmatprep.subr.bf16.mxu0 0
        %1161 = vmatpush1.bf16.msra.mxu0 0
        %1162 = vmatprep.subr.bf16.mxu0 0
        %1163 = vmatpush1.bf16.msra.mxu0 0
        %1164 = vmatprep.subr.bf16.mxu0 0
        %1165 = vmatpush1.bf16.msra.mxu0 0
        %1166 = vmatprep.subr.bf16.mxu0 0
        %1167 = vmatpush1.bf16.msra.mxu0 0
        %1168 = vmatprep.subr.bf16.mxu0 0
        %1169 = vmatpush1.bf16.msra.mxu0 0
        %1170 = vmatprep.subr.bf16.mxu0 0
        %1171 = vmatpush1.bf16.msra.mxu0 0
        %1172 = vmatprep.subr.bf16.mxu0 0
        %1173 = vmatpush1.bf16.msra.mxu0 0
        %1174 = vmatprep.subr.bf16.mxu0 0
        %1175 = vmatpush1.bf16.msra.mxu0 0
        %1176 = vmatprep.subr.bf16.mxu0 0
        %1177 = vmatpush1.bf16.msra.mxu0 0
        %1178 = vmatprep.subr.bf16.mxu0 0
        %1179 = vmatpush1.bf16.msra.mxu0 0
        %1180 = vmatprep.mubr.bf16.mxu0 0
        %1181 = vmatmul.mubr.bf16.gmra.mrb[0].mxu0 %v1146
        %v1182 = vpop.f32.mrb[0].mxu0
        %v1183 = vadd.f32 0.0, %v1182
        %v1184 = vpop.f32.mrb[0].mxu0
        %v1185 = vadd.f32 0.0, %v1184
        %v1186 = vpop.f32.mrb[0].mxu0
        %v1187 = vadd.f32 0.0, %v1186
        %v1188 = vpop.f32.mrb[0].mxu0
        %v1189 = vadd.f32 0.0, %v1188
        %1190 = vdwg.mxu0
        %v1191 = vadd.f32 %v1101, %v1183
        %v1192 = vadd.f32 %v1102, %v1185
        %v1193 = vadd.f32 %v1103, %v1187
        %v1194 = vadd.f32 %v1104, %v1189
        %1195 = vrot.lane.b32.xlu0 %v411, 112
        %v1196 = vpop.permute.xlu0 %1195
        %1197 = vrot.lane.b32.xlu0 %v413, 112
        %v1198 = vpop.permute.xlu0 %1197
        %1199 = vrot.lane.b32.xlu0 %v412, 112
        %v1200 = vpop.permute.xlu0 %1199
        %1201 = vrot.lane.b32.xlu0 %v414, 112
        %v1202 = vpop.permute.xlu0 %1201
        %vm1203 = vcmp.lt.s32.totalorder %v612, 112
        %v1204 = vsel %vm1203, %v1196, %v1200
        %v1205 = vsel %vm1203, %v1198, %v1202
        %v1206 = vsel %vm1203, %v1200, %v1196
        %v1207 = vsel %vm1203, %v1202, %v1198
        %s1208 = scalar_lea.vmem [#allocation8], 14
        %v1209 = vld [vmem:[%s1208] sm:$0x3]
        %v1211 = vlaneseq
        %v1212 = vshrl.u32 %v1211, 7
        %v1213 = vsub.s32 0, %v1212
        %v1214 = vrot.slane %v1209, %v1213
        %v1215 = vlaneseq
        %v1216 = vshrl.u32 %v1215, 7
        %v1217 = vsub.s32 1, %v1216
        %v1218 = vrot.slane %v1209, %v1217
        %v1221 = vmul.f32 %v1204, %v1214
        %v1222 = vmul.f32 %v1206, %v1218
        %v1223 = vmul.f32 %v1205, %v1214
        %v1224 = vmul.f32 %v1207, %v1218
        %s1225 = scalar_lea.vmem %s2, 56
        %v1226 = vld [vmem:[%s1225] sm:$0xf]
        %v1227 = vld [vmem:[%s1225 + $0x4] sm:$0xf]
        %v1228 = vpack.c.bf16 %v1223, %v1221
        %v1229 = vpack.c.bf16 %v1224, %v1222
        %v1232 = vunpack.c.l.b16 %v1226
        %v1233 = vunpack.c.l.b16 %v1227
        %v1234 = vpack.c.b16 %v1233, %v1232
        %v1236 = vsel %vm426, %v1234, 0
        %1238 = vmatprep.subr.bf16.mxu0 %v1229
        %1239 = vmatpush1.bf16.msra.mxu0 %v1228
        %1240 = vmatprep.subr.bf16.mxu0 0
        %1241 = vmatpush1.bf16.msra.mxu0 0
        %1242 = vmatprep.subr.bf16.mxu0 0
        %1243 = vmatpush1.bf16.msra.mxu0 0
        %1244 = vmatprep.subr.bf16.mxu0 0
        %1245 = vmatpush1.bf16.msra.mxu0 0
        %1246 = vmatprep.subr.bf16.mxu0 0
        %1247 = vmatpush1.bf16.msra.mxu0 0
        %1248 = vmatprep.subr.bf16.mxu0 0
        %1249 = vmatpush1.bf16.msra.mxu0 0
        %1250 = vmatprep.subr.bf16.mxu0 0
        %1251 = vmatpush1.bf16.msra.mxu0 0
        %1252 = vmatprep.subr.bf16.mxu0 0
        %1253 = vmatpush1.bf16.msra.mxu0 0
        %1254 = vmatprep.subr.bf16.mxu0 0
        %1255 = vmatpush1.bf16.msra.mxu0 0
        %1256 = vmatprep.subr.bf16.mxu0 0
        %1257 = vmatpush1.bf16.msra.mxu0 0
        %1258 = vmatprep.subr.bf16.mxu0 0
        %1259 = vmatpush1.bf16.msra.mxu0 0
        %1260 = vmatprep.subr.bf16.mxu0 0
        %1261 = vmatpush1.bf16.msra.mxu0 0
        %1262 = vmatprep.subr.bf16.mxu0 0
        %1263 = vmatpush1.bf16.msra.mxu0 0
        %1264 = vmatprep.subr.bf16.mxu0 0
        %1265 = vmatpush1.bf16.msra.mxu0 0
        %1266 = vmatprep.subr.bf16.mxu0 0
        %1267 = vmatpush1.bf16.msra.mxu0 0
        %1268 = vmatprep.subr.bf16.mxu0 0
        %1269 = vmatpush1.bf16.msra.mxu0 0
        %1270 = vmatprep.mubr.bf16.mxu0 0
        %1271 = vmatmul.mubr.bf16.gmra.mrb[0].mxu0 %v1236
        %v1272 = vpop.f32.mrb[0].mxu0
        %v1273 = vadd.f32 0.0, %v1272
        %v1274 = vpop.f32.mrb[0].mxu0
        %v1275 = vadd.f32 0.0, %v1274
        %v1276 = vpop.f32.mrb[0].mxu0
        %v1277 = vadd.f32 0.0, %v1276
        %v1278 = vpop.f32.mrb[0].mxu0
        %v1279 = vadd.f32 0.0, %v1278
        %1280 = vdwg.mxu0
        %v1281 = vadd.f32 %v1191, %v1273
        %v1282 = vadd.f32 %v1192, %v1275
        %v1283 = vadd.f32 %v1193, %v1277
        %v1284 = vadd.f32 %v1194, %v1279
        %1285 = vrot.lane.b32.xlu0 %v411, 111
        %v1286 = vpop.permute.xlu0 %1285
        %1287 = vrot.lane.b32.xlu0 %v413, 111
        %v1288 = vpop.permute.xlu0 %1287
        %1289 = vrot.lane.b32.xlu0 %v412, 111
        %v1290 = vpop.permute.xlu0 %1289
        %1291 = vrot.lane.b32.xlu0 %v414, 111
        %v1292 = vpop.permute.xlu0 %1291
        %vm1293 = vcmp.lt.s32.totalorder %v612, 111
        %v1294 = vsel %vm1293, %v1286, %v1290
        %v1295 = vsel %vm1293, %v1288, %v1292
        %v1296 = vsel %vm1293, %v1290, %v1286
        %v1297 = vsel %vm1293, %v1292, %v1288
        %s1298 = scalar_lea.vmem [#allocation8], 16
        %v1299 = vld [vmem:[%s1298] sm:$0x3]
        %v1301 = vlaneseq
        %v1302 = vshrl.u32 %v1301, 7
        %v1303 = vsub.s32 0, %v1302
        %v1304 = vrot.slane %v1299, %v1303
        %v1305 = vlaneseq
        %v1306 = vshrl.u32 %v1305, 7
        %v1307 = vsub.s32 1, %v1306
        %v1308 = vrot.slane %v1299, %v1307
        %v1311 = vmul.f32 %v1294, %v1304
        %v1312 = vmul.f32 %v1296, %v1308
        %v1313 = vmul.f32 %v1295, %v1304
        %v1314 = vmul.f32 %v1297, %v1308
        %s1315 = scalar_lea.vmem %s2, 64
        %v1316 = vld [vmem:[%s1315] sm:$0xf]
        %v1317 = vld [vmem:[%s1315 + $0x4] sm:$0xf]
        %v1318 = vpack.c.bf16 %v1313, %v1311
        %v1319 = vpack.c.bf16 %v1314, %v1312
        %v1322 = vunpack.c.l.b16 %v1316
        %v1323 = vunpack.c.l.b16 %v1317
        %v1324 = vpack.c.b16 %v1323, %v1322
        %v1326 = vsel %vm426, %v1324, 0
        %1328 = vmatprep.subr.bf16.mxu0 %v1319
        %1329 = vmatpush1.bf16.msra.mxu0 %v1318
        %1330 = vmatprep.subr.bf16.mxu0 0
        %1331 = vmatpush1.bf16.msra.mxu0 0
        %1332 = vmatprep.subr.bf16.mxu0 0
        %1333 = vmatpush1.bf16.msra.mxu0 0
        %1334 = vmatprep.subr.bf16.mxu0 0
        %1335 = vmatpush1.bf16.msra.mxu0 0
        %1336 = vmatprep.subr.bf16.mxu0 0
        %1337 = vmatpush1.bf16.msra.mxu0 0
        %1338 = vmatprep.subr.bf16.mxu0 0
        %1339 = vmatpush1.bf16.msra.mxu0 0
        %1340 = vmatprep.subr.bf16.mxu0 0
        %1341 = vmatpush1.bf16.msra.mxu0 0
        %1342 = vmatprep.subr.bf16.mxu0 0
        %1343 = vmatpush1.bf16.msra.mxu0 0
        %1344 = vmatprep.subr.bf16.mxu0 0
        %1345 = vmatpush1.bf16.msra.mxu0 0
        %1346 = vmatprep.subr.bf16.mxu0 0
        %1347 = vmatpush1.bf16.msra.mxu0 0
        %1348 = vmatprep.subr.bf16.mxu0 0
        %1349 = vmatpush1.bf16.msra.mxu0 0
        %1350 = vmatprep.subr.bf16.mxu0 0
        %1351 = vmatpush1.bf16.msra.mxu0 0
        %1352 = vmatprep.subr.bf16.mxu0 0
        %1353 = vmatpush1.bf16.msra.mxu0 0
        %1354 = vmatprep.subr.bf16.mxu0 0
        %1355 = vmatpush1.bf16.msra.mxu0 0
        %1356 = vmatprep.subr.bf16.mxu0 0
        %1357 = vmatpush1.bf16.msra.mxu0 0
        %1358 = vmatprep.subr.bf16.mxu0 0
        %1359 = vmatpush1.bf16.msra.mxu0 0
        %1360 = vmatprep.mubr.bf16.mxu0 0
        %1361 = vmatmul.mubr.bf16.gmra.mrb[0].mxu0 %v1326
        %v1362 = vpop.f32.mrb[0].mxu0
        %v1363 = vadd.f32 0.0, %v1362
        %v1364 = vpop.f32.mrb[0].mxu0
        %v1365 = vadd.f32 0.0, %v1364
        %v1366 = vpop.f32.mrb[0].mxu0
        %v1367 = vadd.f32 0.0, %v1366
        %v1368 = vpop.f32.mrb[0].mxu0
        %v1369 = vadd.f32 0.0, %v1368
        %1370 = vdwg.mxu0
        %v1371 = vadd.f32 %v1281, %v1363
        %v1372 = vadd.f32 %v1282, %v1365
        %v1373 = vadd.f32 %v1283, %v1367
        %v1374 = vadd.f32 %v1284, %v1369
        %v1375 = vld [vmem:[%s3] sm:$0xff]
        %v1376 = vld [vmem:[%s3 + $0x8] sm:$0xff]
        %1378 = vset.pattern.permute.xlu0 0
        %1379 = vperm.xlu0 %1378, %v1375
        %v1380 = vpop.permute.xlu0 %1379
        %1383 = vset.pattern.permute.xlu0 0
        %1384 = vperm.xlu0 %1383, %v1376
        %v1385 = vpop.permute.xlu0 %1384
        %v1387 = vadd.f32 %v1371, %v1380
        %v1388 = vadd.f32 %v1372, %v1380
        %v1389 = vadd.f32 %v1373, %v1385
        %v1390 = vadd.f32 %v1374, %v1385
        %v1391 = vpack.c.bf16 %v1389, %v1387
        %v1392 = vpack.c.bf16 %v1390, %v1388
        %1393 = vst [vmem:[#allocation2] sm:$0xff] %v1391
        %1394 = vst [vmem:[#allocation2 + $0x8] sm:$0xff] %v1392
        %s1395 = sshra.s32 %s410, 7
        %s1396 = sand.u32 %s410, 127
        %s1397 = smul.addr %s1395, 8
        %s1398 = scalar_lea.vmem [#allocation2], %s1397
        %v1399 = vld [vmem:[%s1398] sm:$0xff]
        %1400 = vxpose.xlu0.c.b16.start [1/8] %v1391, 128
        %1401 = vxpose.xlu0.c.b16.cont [2/8] 0, 128
        %1402 = vxpose.xlu0.c.b16.cont [3/8] 0, 128
        %1403 = vxpose.xlu0.c.b16.cont [4/8] 0, 128
        %1404 = vxpose.xlu0.c.b16.cont [5/8] 0, 128
        %1405 = vxpose.xlu0.c.b16.cont [6/8] 0, 128
        %1406 = vxpose.xlu0.c.b16.cont [7/8] 0, 128
        %1407 = vxpose.xlu0.c.b16.end [8/8] 0, 128
        %v1408 = vpop.trf.xlu0
        %v1409 = vpop.trf.xlu0
        %v1410 = vpop.trf.xlu0
        %v1411 = vpop.trf.xlu0
        %v1412 = vpop.trf.xlu0
        %v1413 = vpop.trf.xlu0
        %v1414 = vpop.trf.xlu0
        %v1415 = vpop.trf.xlu0
        %1416 = vxpose.xlu0.c.b16.start [1/8] %v1392, 128
        %1417 = vxpose.xlu0.c.b16.cont [2/8] 0, 128
        %1418 = vxpose.xlu0.c.b16.cont [3/8] 0, 128
        %1419 = vxpose.xlu0.c.b16.cont [4/8] 0, 128
        %1420 = vxpose.xlu0.c.b16.cont [5/8] 0, 128
        %1421 = vxpose.xlu0.c.b16.cont [6/8] 0, 128
        %1422 = vxpose.xlu0.c.b16.cont [7/8] 0, 128
        %1423 = vxpose.xlu0.c.b16.end [8/8] 0, 128
        %v1424 = vpop.trf.xlu0
        %v1425 = vpop.trf.xlu0
        %v1426 = vpop.trf.xlu0
        %v1427 = vpop.trf.xlu0
        %v1428 = vpop.trf.xlu0
        %v1429 = vpop.trf.xlu0
        %v1430 = vpop.trf.xlu0
        %v1431 = vpop.trf.xlu0
        %v1433 = vsel %vm426, %v1408, 0
        %v1436 = vsel %vm426, %v1409, 0
        %v1439 = vsel %vm426, %v1410, 0
        %v1442 = vsel %vm426, %v1411, 0
        %v1445 = vsel %vm426, %v1412, 0
        %v1448 = vsel %vm426, %v1413, 0
        %v1451 = vsel %vm426, %v1414, 0
        %v1454 = vsel %vm426, %v1415, 0
        %v1457 = vsel %vm426, %v1424, 0
        %v1460 = vsel %vm426, %v1425, 0
        %v1463 = vsel %vm426, %v1426, 0
        %v1466 = vsel %vm426, %v1427, 0
        %v1469 = vsel %vm426, %v1428, 0
        %v1472 = vsel %vm426, %v1429, 0
        %v1475 = vsel %vm426, %v1430, 0
        %v1478 = vsel %vm426, %v1431, 0
        %1480 = vmatprep.subr.bf16.mxu0 0
        %1481 = vmatpush1.bf16.msra.mxu0 %v1399
        %1482 = vmatprep.subr.bf16.mxu0 0
        %1483 = vmatpush1.bf16.msra.mxu0 0
        %1484 = vmatprep.subr.bf16.mxu0 0
        %1485 = vmatpush1.bf16.msra.mxu0 0
        %1486 = vmatprep.subr.bf16.mxu0 0
        %1487 = vmatpush1.bf16.msra.mxu0 0
        %1488 = vmatprep.subr.bf16.mxu0 0
        %1489 = vmatpush1.bf16.msra.mxu0 0
        %1490 = vmatprep.subr.bf16.mxu0 0
        %1491 = vmatpush1.bf16.msra.mxu0 0
        %1492 = vmatprep.subr.bf16.mxu0 0
        %1493 = vmatpush1.bf16.msra.mxu0 0
        %1494 = vmatprep.subr.bf16.mxu0 0
        %1495 = vmatpush1.bf16.msra.mxu0 0
        %1496 = vmatprep.subr.bf16.mxu0 0
        %1497 = vmatpush1.bf16.msra.mxu0 0
        %1498 = vmatprep.subr.bf16.mxu0 0
        %1499 = vmatpush1.bf16.msra.mxu0 0
        %1500 = vmatprep.subr.bf16.mxu0 0
        %1501 = vmatpush1.bf16.msra.mxu0 0
        %1502 = vmatprep.subr.bf16.mxu0 0
        %1503 = vmatpush1.bf16.msra.mxu0 0
        %1504 = vmatprep.subr.bf16.mxu0 0
        %1505 = vmatpush1.bf16.msra.mxu0 0
        %1506 = vmatprep.subr.bf16.mxu0 0
        %1507 = vmatpush1.bf16.msra.mxu0 0
        %1508 = vmatprep.subr.bf16.mxu0 0
        %1509 = vmatpush1.bf16.msra.mxu0 0
        %1510 = vmatprep.subr.bf16.mxu0 0
        %1511 = vmatpush1.bf16.msra.mxu0 0
        %1512 = vmatprep.mubr.bf16.mxu0 0
        %1513 = vmatmul.mubr.bf16.gmra.mrb[0].mxu0 %v1433
        %v1514 = vpop.f32.mrb[0].mxu0
        %v1515 = vadd.f32 0.0, %v1514
        %v1516 = vpop.f32.mrb[0].mxu0
        %v1517 = vpop.f32.mrb[0].mxu0
        %v1518 = vadd.f32 0.0, %v1517
        %v1519 = vpop.f32.mrb[0].mxu0
        %1520 = vmatprep.mubr.bf16.mxu0 0
        %1521 = vmatmul.mubr.bf16.gmra.mrb[0].mxu0 %v1436
        %v1522 = vpop.f32.mrb[0].mxu0
        %v1523 = vadd.f32 0.0, %v1522
        %v1524 = vpop.f32.mrb[0].mxu0
        %v1525 = vpop.f32.mrb[0].mxu0
        %v1526 = vadd.f32 0.0, %v1525
        %v1527 = vpop.f32.mrb[0].mxu0
        %1528 = vmatprep.mubr.bf16.mxu0 0
        %1529 = vmatmul.mubr.bf16.gmra.mrb[0].mxu0 %v1439
        %v1530 = vpop.f32.mrb[0].mxu0
        %v1531 = vadd.f32 0.0, %v1530
        %v1532 = vpop.f32.mrb[0].mxu0
        %v1533 = vpop.f32.mrb[0].mxu0
        %v1534 = vadd.f32 0.0, %v1533
        %v1535 = vpop.f32.mrb[0].mxu0
        %1536 = vmatprep.mubr.bf16.mxu0 0
        %1537 = vmatmul.mubr.bf16.gmra.mrb[0].mxu0 %v1442
        %v1538 = vpop.f32.mrb[0].mxu0
        %v1539 = vadd.f32 0.0, %v1538
        %v1540 = vpop.f32.mrb[0].mxu0
        %v1541 = vpop.f32.mrb[0].mxu0
        %v1542 = vadd.f32 0.0, %v1541
        %v1543 = vpop.f32.mrb[0].mxu0
        %1544 = vmatprep.mubr.bf16.mxu0 0
        %1545 = vmatmul.mubr.bf16.gmra.mrb[0].mxu0 %v1445
        %v1546 = vpop.f32.mrb[0].mxu0
        %v1547 = vadd.f32 0.0, %v1546
        %v1548 = vpop.f32.mrb[0].mxu0
        %v1549 = vpop.f32.mrb[0].mxu0
        %v1550 = vadd.f32 0.0, %v1549
        %v1551 = vpop.f32.mrb[0].mxu0
        %1552 = vmatprep.mubr.bf16.mxu0 0
        %1553 = vmatmul.mubr.bf16.gmra.mrb[0].mxu0 %v1448
        %v1554 = vpop.f32.mrb[0].mxu0
        %v1555 = vadd.f32 0.0, %v1554
        %v1556 = vpop.f32.mrb[0].mxu0
        %v1557 = vpop.f32.mrb[0].mxu0
        %v1558 = vadd.f32 0.0, %v1557
        %v1559 = vpop.f32.mrb[0].mxu0
        %1560 = vmatprep.mubr.bf16.mxu0 0
        %1561 = vmatmul.mubr.bf16.gmra.mrb[0].mxu0 %v1451
        %v1562 = vpop.f32.mrb[0].mxu0
        %v1563 = vadd.f32 0.0, %v1562
        %v1564 = vpop.f32.mrb[0].mxu0
        %v1565 = vpop.f32.mrb[0].mxu0
        %v1566 = vadd.f32 0.0, %v1565
        %v1567 = vpop.f32.mrb[0].mxu0
        %1568 = vmatprep.mubr.bf16.mxu0 0
        %1569 = vmatmul.mubr.bf16.gmra.mrb[0].mxu0 %v1454
        %v1570 = vpop.f32.mrb[0].mxu0
        %v1571 = vadd.f32 0.0, %v1570
        %v1572 = vpop.f32.mrb[0].mxu0
        %v1573 = vpop.f32.mrb[0].mxu0
        %v1574 = vadd.f32 0.0, %v1573
        %v1575 = vpop.f32.mrb[0].mxu0
        %1576 = vmatprep.mubr.bf16.mxu0 0
        %1577 = vmatmul.mubr.bf16.gmra.mrb[0].mxu0 %v1457
        %v1578 = vpop.f32.mrb[0].mxu0
        %v1579 = vadd.f32 0.0, %v1578
        %v1580 = vpop.f32.mrb[0].mxu0
        %v1581 = vpop.f32.mrb[0].mxu0
        %v1582 = vadd.f32 0.0, %v1581
        %v1583 = vpop.f32.mrb[0].mxu0
        %1584 = vmatprep.mubr.bf16.mxu0 0
        %1585 = vmatmul.mubr.bf16.gmra.mrb[0].mxu0 %v1460
        %v1586 = vpop.f32.mrb[0].mxu0
        %v1587 = vadd.f32 0.0, %v1586
        %v1588 = vpop.f32.mrb[0].mxu0
        %v1589 = vpop.f32.mrb[0].mxu0
        %v1590 = vadd.f32 0.0, %v1589
        %v1591 = vpop.f32.mrb[0].mxu0
        %1592 = vmatprep.mubr.bf16.mxu0 0
        %1593 = vmatmul.mubr.bf16.gmra.mrb[0].mxu0 %v1463
        %v1594 = vpop.f32.mrb[0].mxu0
        %v1595 = vadd.f32 0.0, %v1594
        %v1596 = vpop.f32.mrb[0].mxu0
        %v1597 = vpop.f32.mrb[0].mxu0
        %v1598 = vadd.f32 0.0, %v1597
        %v1599 = vpop.f32.mrb[0].mxu0
        %1600 = vmatprep.mubr.bf16.mxu0 0
        %1601 = vmatmul.mubr.bf16.gmra.mrb[0].mxu0 %v1466
        %v1602 = vpop.f32.mrb[0].mxu0
        %v1603 = vadd.f32 0.0, %v1602
        %v1604 = vpop.f32.mrb[0].mxu0
        %v1605 = vpop.f32.mrb[0].mxu0
        %v1606 = vadd.f32 0.0, %v1605
        %v1607 = vpop.f32.mrb[0].mxu0
        %1608 = vmatprep.mubr.bf16.mxu0 0
        %1609 = vmatmul.mubr.bf16.gmra.mrb[0].mxu0 %v1469
        %v1610 = vpop.f32.mrb[0].mxu0
        %v1611 = vadd.f32 0.0, %v1610
        %v1612 = vpop.f32.mrb[0].mxu0
        %v1613 = vpop.f32.mrb[0].mxu0
        %v1614 = vadd.f32 0.0, %v1613
        %v1615 = vpop.f32.mrb[0].mxu0
        %1616 = vmatprep.mubr.bf16.mxu0 0
        %1617 = vmatmul.mubr.bf16.gmra.mrb[0].mxu0 %v1472
        %v1618 = vpop.f32.mrb[0].mxu0
        %v1619 = vadd.f32 0.0, %v1618
        %v1620 = vpop.f32.mrb[0].mxu0
        %v1621 = vpop.f32.mrb[0].mxu0
        %v1622 = vadd.f32 0.0, %v1621
        %v1623 = vpop.f32.mrb[0].mxu0
        %1624 = vmatprep.mubr.bf16.mxu0 0
        %1625 = vmatmul.mubr.bf16.gmra.mrb[0].mxu0 %v1475
        %v1626 = vpop.f32.mrb[0].mxu0
        %v1627 = vadd.f32 0.0, %v1626
        %v1628 = vpop.f32.mrb[0].mxu0
        %v1629 = vpop.f32.mrb[0].mxu0
        %v1630 = vadd.f32 0.0, %v1629
        %v1631 = vpop.f32.mrb[0].mxu0
        %1632 = vmatprep.mubr.bf16.mxu0 0
        %1633 = vmatmul.mubr.bf16.gmra.mrb[0].mxu0 %v1478
        %v1634 = vpop.f32.mrb[0].mxu0
        %v1635 = vadd.f32 0.0, %v1634
        %v1636 = vpop.f32.mrb[0].mxu0
        %v1637 = vpop.f32.mrb[0].mxu0
        %v1638 = vadd.f32 0.0, %v1637
        %v1639 = vpop.f32.mrb[0].mxu0
        %1640 = vdwg.mxu0
        %v1641 = vmax.f32 %v1515, %v1531
        %v1642 = vmax.f32 %v1518, %v1534
        %v1643 = vmax.f32 %v1523, %v1539
        %v1644 = vmax.f32 %v1526, %v1542
        %v1645 = vmax.f32 %v1641, %v1547
        %v1646 = vmax.f32 %v1642, %v1550
        %v1647 = vmax.f32 %v1643, %v1555
        %v1648 = vmax.f32 %v1644, %v1558
        %v1649 = vmax.f32 %v1645, %v1563
        %v1650 = vmax.f32 %v1646, %v1566
        %v1651 = vmax.f32 %v1647, %v1571
        %v1652 = vmax.f32 %v1648, %v1574
        %v1653 = vmax.f32 %v1649, %v1579
        %v1654 = vmax.f32 %v1650, %v1582
        %v1655 = vmax.f32 %v1651, %v1587
        %v1656 = vmax.f32 %v1652, %v1590
        %v1657 = vmax.f32 %v1653, %v1595
        %v1658 = vmax.f32 %v1654, %v1598
        %v1659 = vmax.f32 %v1655, %v1603
        %v1660 = vmax.f32 %v1656, %v1606
        %v1661 = vmax.f32 %v1657, %v1611
        %v1662 = vmax.f32 %v1658, %v1614
        %v1663 = vmax.f32 %v1659, %v1619
        %v1664 = vmax.f32 %v1660, %v1622
        %v1665 = vmax.f32 %v1661, %v1627
        %v1666 = vmax.f32 %v1662, %v1630
        %v1667 = vmax.f32 %v1663, %v1635
        %v1668 = vmax.f32 %v1664, %v1638
        %v1669 = vmax.f32 %v1665, %v1666
        %v1670 = vmax.f32 %v1667, %v1668
        %v1671 = vmax.f32 %v1669, %v1670
        %v1672 = vrot.slane %v1671, 4
        %v1673 = vmax.f32 %v1671, %v1672
        %v1674 = vrot.slane %v1673, 2
        %v1675 = vmax.f32 %v1673, %v1674
        %v1676 = vrot.slane %v1675, 1
        %v1677 = vmax.f32 %v1675, %v1676
        %v1678 = vsub.f32 %v1515, %v1677
        %v1679 = vsub.f32 %v1518, %v1677
        %v1680 = vsub.f32 %v1523, %v1677
        %v1681 = vsub.f32 %v1526, %v1677
        %v1682 = vsub.f32 %v1531, %v1677
        %v1683 = vsub.f32 %v1534, %v1677
        %v1684 = vsub.f32 %v1539, %v1677
        %v1685 = vsub.f32 %v1542, %v1677
        %v1686 = vsub.f32 %v1547, %v1677
        %v1687 = vsub.f32 %v1550, %v1677
        %v1688 = vsub.f32 %v1555, %v1677
        %v1689 = vsub.f32 %v1558, %v1677
        %v1690 = vsub.f32 %v1563, %v1677
        %v1691 = vsub.f32 %v1566, %v1677
        %v1692 = vsub.f32 %v1571, %v1677
        %v1693 = vsub.f32 %v1574, %v1677
        %v1694 = vsub.f32 %v1579, %v1677
        %v1695 = vsub.f32 %v1582, %v1677
        %v1696 = vsub.f32 %v1587, %v1677
        %v1697 = vsub.f32 %v1590, %v1677
        %v1698 = vsub.f32 %v1595, %v1677
        %v1699 = vsub.f32 %v1598, %v1677
        %v1700 = vsub.f32 %v1603, %v1677
        %v1701 = vsub.f32 %v1606, %v1677
        %v1702 = vsub.f32 %v1611, %v1677
        %v1703 = vsub.f32 %v1614, %v1677
        %v1704 = vsub.f32 %v1619, %v1677
        %v1705 = vsub.f32 %v1622, %v1677
        %v1706 = vsub.f32 %v1627, %v1677
        %v1707 = vsub.f32 %v1630, %v1677
        %v1708 = vsub.f32 %v1635, %v1677
        %v1709 = vsub.f32 %v1638, %v1677
        %v1710 = vmul.f32 %v1678, 1.442695
        %v1711 = vpow.pop %v1710
        %v1712 = vmul.f32 %v1679, 1.442695
        %v1713 = vpow.pop %v1712
        %v1714 = vmul.f32 %v1680, 1.442695
        %v1715 = vpow.pop %v1714
        %v1716 = vmul.f32 %v1681, 1.442695
        %v1717 = vpow.pop %v1716
        %v1718 = vmul.f32 %v1682, 1.442695
        %v1719 = vpow.pop %v1718
        %v1720 = vmul.f32 %v1683, 1.442695
        %v1721 = vpow.pop %v1720
        %v1722 = vmul.f32 %v1684, 1.442695
        %v1723 = vpow.pop %v1722
        %v1724 = vmul.f32 %v1685, 1.442695
        %v1725 = vpow.pop %v1724
        %v1726 = vmul.f32 %v1686, 1.442695
        %v1727 = vpow.pop %v1726
        %v1728 = vmul.f32 %v1687, 1.442695
        %v1729 = vpow.pop %v1728
        %v1730 = vmul.f32 %v1688, 1.442695
        %v1731 = vpow.pop %v1730
        %v1732 = vmul.f32 %v1689, 1.442695
        %v1733 = vpow.pop %v1732
        %v1734 = vmul.f32 %v1690, 1.442695
        %v1735 = vpow.pop %v1734
        %v1736 = vmul.f32 %v1691, 1.442695
        %v1737 = vpow.pop %v1736
        %v1738 = vmul.f32 %v1692, 1.442695
        %v1739 = vpow.pop %v1738
        %v1740 = vmul.f32 %v1693, 1.442695
        %v1741 = vpow.pop %v1740
        %v1742 = vmul.f32 %v1694, 1.442695
        %v1743 = vpow.pop %v1742
        %v1744 = vmul.f32 %v1695, 1.442695
        %v1745 = vpow.pop %v1744
        %v1746 = vmul.f32 %v1696, 1.442695
        %v1747 = vpow.pop %v1746
        %v1748 = vmul.f32 %v1697, 1.442695
        %v1749 = vpow.pop %v1748
        %v1750 = vmul.f32 %v1698, 1.442695
        %v1751 = vpow.pop %v1750
        %v1752 = vmul.f32 %v1699, 1.442695
        %v1753 = vpow.pop %v1752
        %v1754 = vmul.f32 %v1700, 1.442695
        %v1755 = vpow.pop %v1754
        %v1756 = vmul.f32 %v1701, 1.442695
        %v1757 = vpow.pop %v1756
        %v1758 = vmul.f32 %v1702, 1.442695
        %v1759 = vpow.pop %v1758
        %v1760 = vmul.f32 %v1703, 1.442695
        %v1761 = vpow.pop %v1760
        %v1762 = vmul.f32 %v1704, 1.442695
        %v1763 = vpow.pop %v1762
        %v1764 = vmul.f32 %v1705, 1.442695
        %v1765 = vpow.pop %v1764
        %v1766 = vmul.f32 %v1706, 1.442695
        %v1767 = vpow.pop %v1766
        %v1768 = vmul.f32 %v1707, 1.442695
        %v1769 = vpow.pop %v1768
        %v1770 = vmul.f32 %v1708, 1.442695
        %v1771 = vpow.pop %v1770
        %v1772 = vmul.f32 %v1709, 1.442695
        %v1773 = vpow.pop %v1772
        %v1774 = vadd.f32 %v1711, %v1713
        %v1775 = vadd.f32 %v1774, %v1715
        %v1776 = vadd.f32 %v1775, %v1717
        %v1777 = vadd.f32 %v1776, %v1719
        %v1778 = vadd.f32 %v1777, %v1721
        %v1779 = vadd.f32 %v1778, %v1723
        %v1780 = vadd.f32 %v1779, %v1725
        %v1781 = vadd.f32 %v1780, %v1727
        %v1782 = vadd.f32 %v1781, %v1729
        %v1783 = vadd.f32 %v1782, %v1731
        %v1784 = vadd.f32 %v1783, %v1733
        %v1785 = vadd.f32 %v1784, %v1735
        %v1786 = vadd.f32 %v1785, %v1737
        %v1787 = vadd.f32 %v1786, %v1739
        %v1788 = vadd.f32 %v1787, %v1741
        %v1789 = vadd.f32 %v1788, %v1743
        %v1790 = vadd.f32 %v1789, %v1745
        %v1791 = vadd.f32 %v1790, %v1747
        %v1792 = vadd.f32 %v1791, %v1749
        %v1793 = vadd.f32 %v1792, %v1751
        %v1794 = vadd.f32 %v1793, %v1753
        %v1795 = vadd.f32 %v1794, %v1755
        %v1796 = vadd.f32 %v1795, %v1757
        %v1797 = vadd.f32 %v1796, %v1759
        %v1798 = vadd.f32 %v1797, %v1761
        %v1799 = vadd.f32 %v1798, %v1763
        %v1800 = vadd.f32 %v1799, %v1765
        %v1801 = vadd.f32 %v1800, %v1767
        %v1802 = vadd.f32 %v1801, %v1769
        %v1803 = vadd.f32 %v1802, %v1771
        %v1804 = vadd.f32 %v1803, %v1773
        %v1805 = vrot.slane %v1804, 4
        %v1806 = vadd.f32 %v1804, %v1805
        %v1807 = vrot.slane %v1806, 2
        %v1808 = vadd.f32 %v1806, %v1807
        %v1809 = vrot.slane %v1808, 1
        %v1810 = vadd.f32 %v1808, %v1809
        %v1811 = vrcp.pop %v1810
        %v1812 = vpack.c.bf16 %v1713, %v1711
        %v1813 = vpack.c.bf16 %v1717, %v1715
        %v1814 = vpack.c.bf16 %v1721, %v1719
        %v1815 = vpack.c.bf16 %v1725, %v1723
        %v1816 = vpack.c.bf16 %v1729, %v1727
        %v1817 = vpack.c.bf16 %v1733, %v1731
        %v1818 = vpack.c.bf16 %v1737, %v1735
        %v1819 = vpack.c.bf16 %v1741, %v1739
        %v1820 = vpack.c.bf16 %v1745, %v1743
        %v1821 = vpack.c.bf16 %v1749, %v1747
        %v1822 = vpack.c.bf16 %v1753, %v1751
        %v1823 = vpack.c.bf16 %v1757, %v1755
        %v1824 = vpack.c.bf16 %v1761, %v1759
        %v1825 = vpack.c.bf16 %v1765, %v1763
        %v1826 = vpack.c.bf16 %v1769, %v1767
        %v1827 = vpack.c.bf16 %v1773, %v1771
        %1828 = vmatprep.subr.bf16.mxu0 0
        %1829 = vmatpush1.bf16.msra.mxu0 %v1812
        %1830 = vmatprep.subr.bf16.mxu0 0
        %1831 = vmatpush1.bf16.msra.mxu0 %v1813
        %1832 = vmatprep.subr.bf16.mxu0 0
        %1833 = vmatpush1.bf16.msra.mxu0 %v1814
        %1834 = vmatprep.subr.bf16.mxu0 0
        %1835 = vmatpush1.bf16.msra.mxu0 %v1815
        %1836 = vmatprep.subr.bf16.mxu0 0
        %1837 = vmatpush1.bf16.msra.mxu0 %v1816
        %1838 = vmatprep.subr.bf16.mxu0 0
        %1839 = vmatpush1.bf16.msra.mxu0 %v1817
        %1840 = vmatprep.subr.bf16.mxu0 0
        %1841 = vmatpush1.bf16.msra.mxu0 %v1818
        %1842 = vmatprep.subr.bf16.mxu0 0
        %1843 = vmatpush1.bf16.msra.mxu0 %v1819
        %1844 = vmatprep.subr.bf16.mxu0 0
        %1845 = vmatpush1.bf16.msra.mxu0 %v1820
        %1846 = vmatprep.subr.bf16.mxu0 0
        %1847 = vmatpush1.bf16.msra.mxu0 %v1821
        %1848 = vmatprep.subr.bf16.mxu0 0
        %1849 = vmatpush1.bf16.msra.mxu0 %v1822
        %1850 = vmatprep.subr.bf16.mxu0 0
        %1851 = vmatpush1.bf16.msra.mxu0 %v1823
        %1852 = vmatprep.subr.bf16.mxu0 0
        %1853 = vmatpush1.bf16.msra.mxu0 %v1824
        %1854 = vmatprep.subr.bf16.mxu0 0
        %1855 = vmatpush1.bf16.msra.mxu0 %v1825
        %1856 = vmatprep.subr.bf16.mxu0 0
        %1857 = vmatpush1.bf16.msra.mxu0 %v1826
        %1858 = vmatprep.subr.bf16.mxu0 0
        %1859 = vmatpush1.bf16.msra.mxu0 %v1827
        %1860 = vmatprep.mubr.bf16.mxu0 %v1392
        %1861 = vmatmul.mubr.bf16.gmra.mrb[0].mxu0 %v1391
        %v1862 = vpop.f32.mrb[0].mxu0
        %v1863 = vadd.f32 0.0, %v1862
        %v1864 = vpop.f32.mrb[0].mxu0
        %v1865 = vpop.f32.mrb[0].mxu0
        %v1866 = vadd.f32 0.0, %v1865
        %v1867 = vpop.f32.mrb[0].mxu0
        %1868 = vdwg.mxu0
        %v1869 = vmul.f32 %v1863, %v1811
        %v1870 = vmul.f32 %v1866, %v1811
        %s1871 = smul.addr %s1395, 8
        %s1872 = scalar_lea.vmem %s368, %s1871 [#allocation5]
        %v1873 = vld [vmem:[%s1872] sm:$0xff]
        %v1874 = vld [vmem:[%s1872 + $0x10] sm:$0xff]
        %1876 = vset.pattern.permute.xlu0 0
        %1877 = vperm.xlu0 %1876, %v600
        %v1878 = vpop.permute.xlu0 %1877
        %1881 = vset.pattern.permute.xlu0 0
        %1882 = vperm.xlu0 %1881, %v602
        %v1883 = vpop.permute.xlu0 %1882
        %v1885 = vmul.f32 %v1873, %v1878
        %v1886 = vmul.f32 %v1874, %v1883
        %v1887 = vpack.c.bf16 %v1886, %v1885
        %1888 = vst [vmem:[#allocation3] sm:$0xff] %v1887
        %v1889 = vpack.c.bf16 %v1870, %v1869
        %1890 = vst [vmem:[#allocation3 + $0x8] sm:$0xff] %v1889
        %v1891 = vld [vmem:[%s8] sm:$0xf]
        %v1892 = vld [vmem:[%s8 + $0x4] sm:$0xf]
        %v1893 = vld [vmem:[#allocation3] sm:$0xff]
        %v1894 = vld [vmem:[#allocation3 + $0x8] sm:$0xff]
        %v1895 = vld [vmem:[%s9] sm:$0xff]
        %v1896 = vld [vmem:[%s9 + $0x8] sm:$0xff]
        %1898 = vset.pattern.permute.xlu0 0
        %1899 = vperm.xlu0 %1898, %v1895
        %v1900 = vpop.permute.xlu0 %1899
        %1903 = vset.pattern.permute.xlu0 0
        %1904 = vperm.xlu0 %1903, %v1896
        %v1905 = vpop.permute.xlu0 %1904
        %v1909 = vunpack.c.l.b16 %v1891
        %v1910 = vunpack.c.l.b16 %v1892
        %v1911 = vpack.c.b16 %v1910, %v1909
        %vm1912 = vcmask 261120
        %v1914 = vsel %vm1912, %v1911, 0
        %1916 = vmatprep.subr.bf16.mxu0 0
        %1917 = vmatpush1.bf16.msra.mxu0 %v1893
        %1918 = vmatprep.subr.bf16.mxu0 0
        %1919 = vmatpush1.bf16.msra.mxu0 %v1894
        %1920 = vmatprep.subr.bf16.mxu0 0
        %1921 = vmatpush1.bf16.msra.mxu0 0
        %1922 = vmatprep.subr.bf16.mxu0 0
        %1923 = vmatpush1.bf16.msra.mxu0 0
        %1924 = vmatprep.subr.bf16.mxu0 0
        %1925 = vmatpush1.bf16.msra.mxu0 0
        %1926 = vmatprep.subr.bf16.mxu0 0
        %1927 = vmatpush1.bf16.msra.mxu0 0
        %1928 = vmatprep.subr.bf16.mxu0 0
        %1929 = vmatpush1.bf16.msra.mxu0 0
        %1930 = vmatprep.subr.bf16.mxu0 0
        %1931 = vmatpush1.bf16.msra.mxu0 0
        %1932 = vmatprep.subr.bf16.mxu0 0
        %1933 = vmatpush1.bf16.msra.mxu0 0
        %1934 = vmatprep.subr.bf16.mxu0 0
        %1935 = vmatpush1.bf16.msra.mxu0 0
        %1936 = vmatprep.subr.bf16.mxu0 0
        %1937 = vmatpush1.bf16.msra.mxu0 0
        %1938 = vmatprep.subr.bf16.mxu0 0
        %1939 = vmatpush1.bf16.msra.mxu0 0
        %1940 = vmatprep.subr.bf16.mxu0 0
        %1941 = vmatpush1.bf16.msra.mxu0 0
        %1942 = vmatprep.subr.bf16.mxu0 0
        %1943 = vmatpush1.bf16.msra.mxu0 0
        %1944 = vmatprep.subr.bf16.mxu0 0
        %1945 = vmatpush1.bf16.msra.mxu0 0
        %1946 = vmatprep.subr.bf16.mxu0 0
        %1947 = vmatpush1.bf16.msra.mxu0 0
        %1948 = vmatprep.mubr.bf16.mxu0 0
        %1949 = vmatmul.mubr.bf16.gmra.mrb[0].mxu0 %v1914
        %v1950 = vpop.f32.mrb[0].mxu0
        %v1951 = vadd.f32 %v1900, %v1950
        %v1952 = vpop.f32.mrb[0].mxu0
        %v1953 = vpop.f32.mrb[0].mxu0
        %v1954 = vadd.f32 %v1905, %v1953
        %v1955 = vpop.f32.mrb[0].mxu0
        %1956 = vdwg.mxu0
        %v1957 = vadd.f32 %v1951, %v1873
        %v1958 = vadd.f32 %v1954, %v1874
        %1959 = vst [vmem:[%s408] sm:$0xff] %v1957
        %1960 = vst [vmem:[%s408 + $0x8] sm:$0xff] %v1958
        %s1961 = sand.u32 %s267, 1
        %s1962 = scalar_lea.sflag [#allocation7], %s1961
        %s1963 = sand.u32 %s267, 1
        %s1964 = smul.addr %s1963, 16
        %s1965 = scalar_lea.vmem [#allocation10], %s1964
        // Predicated region
        $region69: #{tpu_custom_call.1} parent=59 // pred_check
          %p1966 = pneg %p277
        $region70: #{tpu_custom_call.1} parent=59 // pred_check_branch
          %1968 = sbr.rel (%p1966) target = $region72
        $region71: #{tpu_custom_call.1} parent=59 // pred_region
          %s1970 = ssub.s32 256, 256
          %1971 = vsyncadd %s1962, %s1970
          %s1972 = smul.addr %s34, 4
          %s1973 = sadd.s32 %s35, %s1972
          %s1974 = smul.addr %s1973, 128
          %s1975 = scalar_lea.hbm %s10, %s1974
          %s1976 = sshll.u32 %s1965, 4
          %s1977 = int_to_ptr.vmem [resolvable:$true] %s1976
          %1982 = dma.vmem_to_hbm [thread:$0]  %s1977, 256, %s1975, %s1962, 128, 256, 8
        $region72: #{tpu_custom_call.1} parent=59 // pred_fallthru
          _
      $region60: #{tpu_custom_call.1} parent=5 // pred_fallthru
        _
      %p1983 = scmp.le.s32.totalorder 2, %s25
      // Predicated region
      $region73: #{tpu_custom_call.1} parent=5 // pred_check
        %p1984 = pneg %p1983
      $region74: #{tpu_custom_call.1} parent=5 // pred_check_branch
        %1986 = sbr.rel (%p1984) target = $region76
      $region75: #{tpu_custom_call.1} parent=5 // pred_region
        %s1987 = ssub.s32 %s25, 2
        // Predicated region
        $region77: #{tpu_custom_call.1} parent=75 // pred_check
          %p1988 = pneg %p283
        $region78: #{tpu_custom_call.1} parent=75 // pred_check_branch
          %1990 = sbr.rel (%p1988) target = $region80
        $region79: #{tpu_custom_call.1} parent=75 // pred_region
          %s1991 = sand.u32 %s268, 1
          %s1992 = scalar_lea.sflag [#allocation7], %s1991
          %s1993 = sand.u32 %s268, 1
          %s1994 = smul.addr %s1993, 16
          %s1995 = scalar_lea.vmem [#allocation10], %s1994
          %1996 = dma.done %s1992, 256
        $region80: #{tpu_custom_call.1} parent=75 // pred_fallthru
          _
      $region76: #{tpu_custom_call.1} parent=5 // pred_fallthru
        _
    $region6: #{tpu_custom_call.1} parent=1 // loop_footer
      %s29 = sadd.s32 1, %s25
    $region7: #{tpu_custom_call.1} parent=1 // loop_footer_branch
      %24 = sbr.rel target = $region3
    $region8: #{tpu_custom_call.1} parent=1 // loop_exit
      _
    %1997 = vsyncpa [#allocation6], 1
    %s1998 = scalar_lea.sflag [#allocation6], 1
    %1999 = vsyncpa %s1998, 1
    %2000 = vsyncpa [#allocation9], 1
    %2001 = vsyncpa [#allocation7], 1
    %s2002 = scalar_lea.sflag [#allocation7], 1
    %2003 = vsyncpa %s2002, 1

</llo_original>
